<compile_context>
chip_gen: v5e
topology: v5e:2x2
jax: 0.10.0
libtpu: 0.0.40
codegen_flags: <defaults>
</compile_context>

<pallas_src>
import functools

import jax
import jax.numpy as jnp
from jax.experimental import pallas as pl
from jax.experimental.pallas import tpu as pltpu


# ----------------------------------------------------------------------------
# Pallas kernel: fused matmul + bias (+ residual) (+ ReLU)
# ----------------------------------------------------------------------------

def _pick_tm(M, K, vmem_budget_bytes=8 * 1024 * 1024):
    """Largest power-of-two row tile dividing M whose (double-buffered, bf16)
    activation block fits a conservative VMEM budget."""
    for t in (1024, 512, 256, 128, 64, 32, 16, 8):
        if M % t == 0 and t * K * 2 * 2 <= vmem_budget_bytes:
            return t
    return M


def fused_matmul_bias_act(a, w, bias, *, relu, residual=None):
    """out = act(a @ w + bias [+ residual]).

    a: (M, K) activations, w: (K, N) BN-folded weights, bias: (N,) f32.
    residual (optional): (M, N) f32, added before the activation.
    MXU inputs are bf16; accumulation and epilogue are f32.
    """
    M, K = a.shape
    _, N = w.shape

    # Pad rows to a sublane multiple if needed (rows are independent).
    m_pad = (-M) % 8
    if m_pad:
        a = jnp.pad(a, ((0, m_pad), (0, 0)))
        if residual is not None:
            residual = jnp.pad(residual, ((0, m_pad), (0, 0)))
    Mp = M + m_pad

    tm = _pick_tm(Mp, K)
    tn = N  # channel counts here (<=512) fit a single lane-dense tile

    a_bf = a.astype(jnp.bfloat16)
    w_bf = w.astype(jnp.bfloat16)
    bias_row = bias.reshape(1, N).astype(jnp.float32)

    grid = (Mp // tm,)
    compiler_params = pltpu.CompilerParams(dimension_semantics=("parallel",))

    if residual is None:
        def kernel(a_ref, w_ref, b_ref, o_ref):
            acc = jnp.dot(a_ref[...], w_ref[...],
                          preferred_element_type=jnp.float32)
            y = acc + b_ref[...]
            if relu:
                y = jnp.maximum(y, 0.0)
            o_ref[...] = y.astype(o_ref.dtype)

        in_specs = [
            pl.BlockSpec((tm, K), lambda i: (i, 0)),
            pl.BlockSpec((K, tn), lambda i: (0, 0)),
            pl.BlockSpec((1, tn), lambda i: (0, 0)),
        ]
        args = (a_bf, w_bf, bias_row)
    else:
        residual_f32 = residual.astype(jnp.float32)

        def kernel(a_ref, w_ref, b_ref, r_ref, o_ref):
            acc = jnp.dot(a_ref[...], w_ref[...],
                          preferred_element_type=jnp.float32)
            y = acc + b_ref[...] + r_ref[...]
            if relu:
                y = jnp.maximum(y, 0.0)
            o_ref[...] = y.astype(o_ref.dtype)

        in_specs = [
            pl.BlockSpec((tm, K), lambda i: (i, 0)),
            pl.BlockSpec((K, tn), lambda i: (0, 0)),
            pl.BlockSpec((1, tn), lambda i: (0, 0)),
            pl.BlockSpec((tm, tn), lambda i: (i, 0)),
        ]
        args = (a_bf, w_bf, bias_row, residual_f32)

    out = pl.pallas_call(
        kernel,
        out_shape=jax.ShapeDtypeStruct((Mp, N), jnp.float32),
        grid=grid,
        in_specs=in_specs,
        out_specs=pl.BlockSpec((tm, tn), lambda i: (i, 0)),
        compiler_params=compiler_params,
    )(*args)

    return out[:M] if m_pad else out


# ----------------------------------------------------------------------------
# Glue: im2col (static strides) and conv+BN(+residual)(+ReLU)
# ----------------------------------------------------------------------------

def im2col(x, kh, kw, stride, pad):
    """x: (N, H, W, C) NHWC -> patches (N*OH*OW, kh*kw*C), plus OH, OW.
    `stride`/`pad` MUST be Python ints (static)."""
    N, H, W, C = x.shape
    OH = (H + 2 * pad - kh) // stride + 1
    OW = (W + 2 * pad - kw) // stride + 1
    xp = jnp.pad(x, ((0, 0), (pad, pad), (pad, pad), (0, 0)))
    cols = []
    for i in range(kh):
        for j in range(kw):
            cols.append(xp[:, i:i + stride * (OH - 1) + 1:stride,
                           j:j + stride * (OW - 1) + 1:stride, :])
    patches = jnp.concatenate(cols, axis=-1)            # (N, OH, OW, kh*kw*C)
    return patches.reshape(N * OH * OW, kh * kw * C), OH, OW


def conv_bn(x_nhwc, w_oihw, bn, *, stride, pad, relu, residual=None):
    """Conv2d(bias=False) + BatchNorm2d(eval) [+ residual] [+ ReLU], fused into
    one Pallas matmul over im2col patches."""
    gamma, beta, mean, var = bn
    cout, cin, kh, kw = w_oihw.shape
    n = x_nhwc.shape[0]
    patches, OH, OW = im2col(x_nhwc, kh, kw, stride, pad)
    w_mat = jnp.transpose(w_oihw, (2, 3, 1, 0)).reshape(kh * kw * cin, cout)
    scale = gamma * jax.lax.rsqrt(var + 1e-5)
    w_folded = w_mat * scale[None, :]          # fold BN scale into weights
    bias = beta - mean * scale                 # remaining BN shift
    out = fused_matmul_bias_act(patches, w_folded, bias,
                                relu=relu, residual=residual)
    return out.reshape(n, OH, OW, cout)


# ----------------------------------------------------------------------------
# BasicBlock forward (matches the PyTorch module's semantics)
# ----------------------------------------------------------------------------

@functools.partial(jax.jit, static_argnames=("stride",))
def basic_block_forward(params, x_nchw, stride):
    """residual = x (or downsample(x)); out = relu(bn2(conv2(relu(bn1(conv1(x))))) + residual)."""
    x = jnp.transpose(x_nchw, (0, 2, 3, 1)).astype(jnp.float32)  # NCHW -> NHWC

    # conv1 -> bn1 -> relu
    out1 = conv_bn(x, params['conv1_w'], params['bn1'],
                   stride=stride, pad=1, relu=True)

    # residual branch (optional downsample = conv1x1(stride) + BN)
    if 'down_conv_w' in params:
        identity = conv_bn(x, params['down_conv_w'], params['down_bn'],
                           stride=stride, pad=0, relu=False)
    else:
        identity = x
    res_flat = identity.reshape(-1, identity.shape[-1])

    # conv2 -> bn2 -> (+ residual) -> relu, all in one matmul epilogue
    out = conv_bn(out1, params['conv2_w'], params['bn2'],
                  stride=1, pad=1, relu=True, residual=res_flat)

    return jnp.transpose(out, (0, 3, 1, 2))  # NHWC -> NCHW


# ----------------------------------------------------------------------------
# Deterministic parameter construction (mirrors PyTorch __init__ shapes)
# ----------------------------------------------------------------------------

def conv_init(key, cout, cin, kh, kw):
    n = kh * kw * cout
    return (jax.random.normal(key, (cout, cin, kh, kw), jnp.float32)
            * (2.0 / n) ** 0.5)


def bn_init(c):
    # (gamma, beta, running_mean, running_var) as at module init (eval-mode fold)
    return (jnp.ones((c,), jnp.float32), jnp.zeros((c,), jnp.float32),
            jnp.zeros((c,), jnp.float32), jnp.ones((c,), jnp.float32))


def make_block_params(key, inplanes, planes, stride):
    k = jax.random.split(key, 3)
    params = {
        'conv1_w': conv_init(k[0], planes, inplanes, 3, 3),
        'bn1': bn_init(planes),
        'conv2_w': conv_init(k[1], planes, planes, 3, 3),
        'bn2': bn_init(planes),
    }
    if stride != 1 or inplanes != planes:
        params['down_conv_w'] = conv_init(k[2], planes, inplanes, 1, 1)
        params['down_bn'] = bn_init(planes)
    return params


# ----------------------------------------------------------------------------

if __name__ == "__main__":
    key = jax.random.PRNGKey(0)
    k1, k2, k3, k4 = jax.random.split(key, 4)

    # Case 1: stride=2 with downsample (inplanes != planes), like a layer-start block.
    params_ds = make_block_params(k1, inplanes=32, planes=64, stride=2)
    x_ds = jax.random.normal(k2, (2, 32, 16, 16), jnp.float32)      # NCHW
    y_ds = basic_block_forward(params_ds, x_ds, stride=2)

    # Case 2: stride=1 identity shortcut (inplanes == planes).
    params_id = make_block_params(k3, inplanes=64, planes=64, stride=1)
    x_id = jax.random.normal(k4, (2, 64, 16, 16), jnp.float32)      # NCHW
    y_id = basic_block_forward(params_id, x_id, stride=1)

    jax.block_until_ready((y_ds, y_id))

    assert y_ds.shape == (2, 64, 8, 8), y_ds.shape
    assert y_id.shape == (2, 64, 16, 16), y_id.shape
    assert bool(jnp.all(jnp.isfinite(y_ds))) and bool(jnp.all(jnp.isfinite(y_id)))
    assert bool(jnp.all(y_ds >= 0.0)) and bool(jnp.all(y_id >= 0.0))  # post-ReLU
    print("KERNEL_OK")
</pallas_src>

<mosaic_0001>
module attributes {stable_mosaic.version = 11 : i64} {
  func.func @kernel(%arg0: i32, %arg1: memref<128x288xbf16, #tpu.memory_space<vmem>>, %arg2: memref<288x64xbf16, #tpu.memory_space<vmem>>, %arg3: memref<1x64xf32, #tpu.memory_space<vmem>>, %arg4: memref<128x64xf32, #tpu.memory_space<vmem>>) attributes {dimension_semantics = [#tpu.dimension_semantics<parallel>], iteration_bounds = array<i64: 1>, scalar_prefetch = 0 : i64, scratch_operands = 0 : i64, tpu.core_type = #tpu.core_type<tc>, window_params = [{transform_indices = @transform_0, window_bounds = array<i64: 128, 288>}, {pipeline_mode = #tpu.pipeline_mode<synchronous>, transform_indices = @transform_1, window_bounds = array<i64: 288, 64>}, {pipeline_mode = #tpu.pipeline_mode<synchronous>, transform_indices = @transform_2, window_bounds = array<i64: 1, 64>}, {transform_indices = @transform_3, window_bounds = array<i64: 128, 64>}]} {
    %c0 = arith.constant 0 : index
    %c0_0 = arith.constant 0 : index
    %0 = vector.load %arg1[%c0, %c0_0] : memref<128x288xbf16, #tpu.memory_space<vmem>>, vector<128x288xbf16>
    %c0_1 = arith.constant 0 : index
    %c0_2 = arith.constant 0 : index
    %1 = vector.load %arg2[%c0_1, %c0_2] : memref<288x64xbf16, #tpu.memory_space<vmem>>, vector<288x64xbf16>
    %cst = arith.constant dense<0.000000e+00> : vector<128x64xf32>
    %2 = tpu.matmul %0, %1, %cst {dimension_numbers = #tpu.dot_dimension_numbers<[1], [0], [0], [1], [0, 0, 1, 1], [], []>} : vector<128x288xbf16>, vector<288x64xbf16>, vector<128x64xf32> -> vector<128x64xf32>
    %c0_3 = arith.constant 0 : index
    %c0_4 = arith.constant 0 : index
    %3 = vector.load %arg3[%c0_3, %c0_4] : memref<1x64xf32, #tpu.memory_space<vmem>>, vector<1x64xf32>
    %4 = vector.broadcast %3 : vector<1x64xf32> to vector<128x64xf32>
    %5 = arith.addf %2, %4 : vector<128x64xf32>
    %cst_5 = arith.constant 0.000000e+00 : f32
    %6 = vector.broadcast %cst_5 : f32 to vector<128x64xf32>
    %7 = arith.maximumf %5, %6 : vector<128x64xf32>
    %c0_6 = arith.constant 0 : index
    %c0_7 = arith.constant 0 : index
    %8 = vector.load %arg4[%c0_6, %c0_7] : memref<128x64xf32, #tpu.memory_space<vmem>>, vector<128x64xf32>
    tpu.vector_store %arg4[%c0_6, %c0_7], %7 {strides = array<i32>} : memref<128x64xf32, #tpu.memory_space<vmem>>, vector<128x64xf32>,
    return
  }
  func.func @transform_0(%arg0: i32) -> (i32, i32) {
    %c0_i32 = arith.constant 0 : i32
    %c0_i32_0 = arith.constant 0 : i32
    return %arg0, %c0_i32 : i32, i32
  }
  func.func @transform_1(%arg0: i32) -> (i32, i32) {
    %c0_i32 = arith.constant 0 : i32
    %c0_i32_0 = arith.constant 0 : i32
    %c0_i32_1 = arith.constant 0 : i32
    return %c0_i32, %c0_i32_0 : i32, i32
  }
  func.func @transform_2(%arg0: i32) -> (i32, i32) {
    %c0_i32 = arith.constant 0 : i32
    %c0_i32_0 = arith.constant 0 : i32
    %c0_i32_1 = arith.constant 0 : i32
    return %c0_i32, %c0_i32_0 : i32, i32
  }
  func.func @transform_3(%arg0: i32) -> (i32, i32) {
    %c0_i32 = arith.constant 0 : i32
    %c0_i32_0 = arith.constant 0 : i32
    return %arg0, %c0_i32 : i32, i32
  }
}

module attributes {stable_mosaic.version = 11 : i64} {
  func.func @kernel(%arg0: i32, %arg1: memref<128x576xbf16, #tpu.memory_space<vmem>>, %arg2: memref<576x64xbf16, #tpu.memory_space<vmem>>, %arg3: memref<1x64xf32, #tpu.memory_space<vmem>>, %arg4: memref<128x64xf32, #tpu.memory_space<vmem>>, %arg5: memref<128x64xf32, #tpu.memory_space<vmem>>) attributes {dimension_semantics = [#tpu.dimension_semantics<parallel>], iteration_bounds = array<i64: 1>, scalar_prefetch = 0 : i64, scratch_operands = 0 : i64, tpu.core_type = #tpu.core_type<tc>, window_params = [{transform_indices = @transform_0, window_bounds = array<i64: 128, 576>}, {pipeline_mode = #tpu.pipeline_mode<synchronous>, transform_indices = @transform_1, window_bounds = array<i64: 576, 64>}, {pipeline_mode = #tpu.pipeline_mode<synchronous>, transform_indices = @transform_2, window_bounds = array<i64: 1, 64>}, {transform_indices = @transform_3, window_bounds = array<i64: 128, 64>}, {transform_indices = @transform_4, window_bounds = array<i64: 128, 64>}]} {
    %c0 = arith.constant 0 : index
    %c0_0 = arith.constant 0 : index
    %0 = vector.load %arg1[%c0, %c0_0] : memref<128x576xbf16, #tpu.memory_space<vmem>>, vector<128x576xbf16>
    %c0_1 = arith.constant 0 : index
    %c0_2 = arith.constant 0 : index
    %1 = vector.load %arg2[%c0_1, %c0_2] : memref<576x64xbf16, #tpu.memory_space<vmem>>, vector<576x64xbf16>
    %cst = arith.constant dense<0.000000e+00> : vector<128x64xf32>
    %2 = tpu.matmul %0, %1, %cst {dimension_numbers = #tpu.dot_dimension_numbers<[1], [0], [0], [1], [0, 0, 1, 1], [], []>} : vector<128x576xbf16>, vector<576x64xbf16>, vector<128x64xf32> -> vector<128x64xf32>
    %c0_3 = arith.constant 0 : index
    %c0_4 = arith.constant 0 : index
    %3 = vector.load %arg3[%c0_3, %c0_4] : memref<1x64xf32, #tpu.memory_space<vmem>>, vector<1x64xf32>
    %4 = vector.broadcast %3 : vector<1x64xf32> to vector<128x64xf32>
    %5 = arith.addf %2, %4 : vector<128x64xf32>
    %c0_5 = arith.constant 0 : index
    %c0_6 = arith.constant 0 : index
    %6 = vector.load %arg4[%c0_5, %c0_6] : memref<128x64xf32, #tpu.memory_space<vmem>>, vector<128x64xf32>
    %7 = arith.addf %5, %6 : vector<128x64xf32>
    %cst_7 = arith.constant 0.000000e+00 : f32
    %8 = vector.broadcast %cst_7 : f32 to vector<128x64xf32>
    %9 = arith.maximumf %7, %8 : vector<128x64xf32>
    %c0_8 = arith.constant 0 : index
    %c0_9 = arith.constant 0 : index
    %10 = vector.load %arg5[%c0_8, %c0_9] : memref<128x64xf32, #tpu.memory_space<vmem>>, vector<128x64xf32>
    tpu.vector_store %arg5[%c0_8, %c0_9], %9 {strides = array<i32>} : memref<128x64xf32, #tpu.memory_space<vmem>>, vector<128x64xf32>,
    return
  }
  func.func @transform_0(%arg0: i32) -> (i32, i32) {
    %c0_i32 = arith.constant 0 : i32
    %c0_i32_0 = arith.constant 0 : i32
    return %arg0, %c0_i32 : i32, i32
  }
  func.func @transform_1(%arg0: i32) -> (i32, i32) {
    %c0_i32 = arith.constant 0 : i32
    %c0_i32_0 = arith.constant 0 : i32
    %c0_i32_1 = arith.constant 0 : i32
    return %c0_i32, %c0_i32_0 : i32, i32
  }
  func.func @transform_2(%arg0: i32) -> (i32, i32) {
    %c0_i32 = arith.constant 0 : i32
    %c0_i32_0 = arith.constant 0 : i32
    %c0_i32_1 = arith.constant 0 : i32
    return %c0_i32, %c0_i32_0 : i32, i32
  }
  func.func @transform_3(%arg0: i32) -> (i32, i32) {
    %c0_i32 = arith.constant 0 : i32
    %c0_i32_0 = arith.constant 0 : i32
    return %arg0, %c0_i32 : i32, i32
  }
  func.func @transform_4(%arg0: i32) -> (i32, i32) {
    %c0_i32 = arith.constant 0 : i32
    %c0_i32_0 = arith.constant 0 : i32
    return %arg0, %c0_i32 : i32, i32
  }
}

module attributes {stable_mosaic.version = 11 : i64} {
  func.func @kernel(%arg0: i32, %arg1: memref<128x32xbf16, #tpu.memory_space<vmem>>, %arg2: memref<32x64xbf16, #tpu.memory_space<vmem>>, %arg3: memref<1x64xf32, #tpu.memory_space<vmem>>, %arg4: memref<128x64xf32, #tpu.memory_space<vmem>>) attributes {dimension_semantics = [#tpu.dimension_semantics<parallel>], iteration_bounds = array<i64: 1>, scalar_prefetch = 0 : i64, scratch_operands = 0 : i64, tpu.core_type = #tpu.core_type<tc>, window_params = [{transform_indices = @transform_0, window_bounds = array<i64: 128, 32>}, {pipeline_mode = #tpu.pipeline_mode<synchronous>, transform_indices = @transform_1, window_bounds = array<i64: 32, 64>}, {pipeline_mode = #tpu.pipeline_mode<synchronous>, transform_indices = @transform_2, window_bounds = array<i64: 1, 64>}, {transform_indices = @transform_3, window_bounds = array<i64: 128, 64>}]} {
    %c0 = arith.constant 0 : index
    %c0_0 = arith.constant 0 : index
    %0 = vector.load %arg1[%c0, %c0_0] : memref<128x32xbf16, #tpu.memory_space<vmem>>, vector<128x32xbf16>
    %c0_1 = arith.constant 0 : index
    %c0_2 = arith.constant 0 : index
    %1 = vector.load %arg2[%c0_1, %c0_2] : memref<32x64xbf16, #tpu.memory_space<vmem>>, vector<32x64xbf16>
    %cst = arith.constant dense<0.000000e+00> : vector<128x64xf32>
    %2 = tpu.matmul %0, %1, %cst {dimension_numbers = #tpu.dot_dimension_numbers<[1], [0], [0], [1], [0, 0, 1, 1], [], []>} : vector<128x32xbf16>, vector<32x64xbf16>, vector<128x64xf32> -> vector<128x64xf32>
    %c0_3 = arith.constant 0 : index
    %c0_4 = arith.constant 0 : index
    %3 = vector.load %arg3[%c0_3, %c0_4] : memref<1x64xf32, #tpu.memory_space<vmem>>, vector<1x64xf32>
    %4 = vector.broadcast %3 : vector<1x64xf32> to vector<128x64xf32>
    %5 = arith.addf %2, %4 : vector<128x64xf32>
    %c0_5 = arith.constant 0 : index
    %c0_6 = arith.constant 0 : index
    %6 = vector.load %arg4[%c0_5, %c0_6] : memref<128x64xf32, #tpu.memory_space<vmem>>, vector<128x64xf32>
    tpu.vector_store %arg4[%c0_5, %c0_6], %5 {strides = array<i32>} : memref<128x64xf32, #tpu.memory_space<vmem>>, vector<128x64xf32>,
    return
  }
  func.func @transform_0(%arg0: i32) -> (i32, i32) {
    %c0_i32 = arith.constant 0 : i32
    %c0_i32_0 = arith.constant 0 : i32
    return %arg0, %c0_i32 : i32, i32
  }
  func.func @transform_1(%arg0: i32) -> (i32, i32) {
    %c0_i32 = arith.constant 0 : i32
    %c0_i32_0 = arith.constant 0 : i32
    %c0_i32_1 = arith.constant 0 : i32
    return %c0_i32, %c0_i32_0 : i32, i32
  }
  func.func @transform_2(%arg0: i32) -> (i32, i32) {
    %c0_i32 = arith.constant 0 : i32
    %c0_i32_0 = arith.constant 0 : i32
    %c0_i32_1 = arith.constant 0 : i32
    return %c0_i32, %c0_i32_0 : i32, i32
  }
  func.func @transform_3(%arg0: i32) -> (i32, i32) {
    %c0_i32 = arith.constant 0 : i32
    %c0_i32_0 = arith.constant 0 : i32
    return %arg0, %c0_i32 : i32, i32
  }
}

</mosaic_0001>

<llo_original>
// kernel: basic_block_forward.4
$region0: #{basic_block_forward.4}
  #allocation0 [shape = 'u32[]', space=smem, size = 0x4, offset = 0x4, fixed_abs, tag = 'smem constant byte address 0x4 - core index']
  #allocation1 [shape = 'u32[72,128]{1,0:T(1,128)}', space=vmem, size = 0x9000, scoped, tag = 'internal scratch']
  %s0 = inlined_call_operand.vmem [shape: bf16[128,32], index: 0, kind: input, shape index: {}]
  %s1 = inlined_call_operand.vmem [shape: bf16[32,64], index: 1, kind: input, shape index: {}]
  %s2 = inlined_call_operand.vmem [shape: f32[1,64], index: 2, kind: input, shape index: {}]
  %s3 = inlined_call_operand.vmem [shape: f32[128,64], index: 3, kind: output, shape index: {}]
  %s4 = sld [smem:[#allocation0]]
  $region22: #{basic_block_forward.4} parent=0
    _
  %s6 = ssub.s32 1, %s4
  %s7 = scalar_select 0, %s6, %s4
  // Predicated region
  $region2: #{basic_block_forward.4} parent=0 // pred_check
    _
  $region3: #{basic_block_forward.4} parent=0 // pred_check_branch
    %9 = sbr.rel (0) target = $region5
  $region4: #{basic_block_forward.4} parent=0 // pred_region
    _
  $region5: #{basic_block_forward.4} parent=0 // pred_fallthru
    _
  // Predicated region
  $region6: #{basic_block_forward.4} parent=0 // pred_check
    _
  $region7: #{basic_block_forward.4} parent=0 // pred_check_branch
    %11 = sbr.rel (0) target = $region9
  $region8: #{basic_block_forward.4} parent=0 // pred_region
    _
  $region9: #{basic_block_forward.4} parent=0 // pred_fallthru
    _
  // Predicated region
  $region10: #{basic_block_forward.4} parent=0 // pred_check
    _
  $region11: #{basic_block_forward.4} parent=0 // pred_check_branch
    %13 = sbr.rel (0) target = $region13
  $region12: #{basic_block_forward.4} parent=0 // pred_region
    _
  $region13: #{basic_block_forward.4} parent=0 // pred_fallthru
    _
  %v15 = vld [vmem:[%s0] sm:$0xf]
  %v16 = vld [vmem:[%s0 + $0x4] sm:$0xf]
  %v17 = vld [vmem:[%s0 + $0x8] sm:$0xf]
  %v18 = vld [vmem:[%s0 + $0xc] sm:$0xf]
  %v19 = vld [vmem:[%s0 + $0x10] sm:$0xf]
  %v20 = vld [vmem:[%s0 + $0x14] sm:$0xf]
  %v21 = vld [vmem:[%s0 + $0x18] sm:$0xf]
  %v22 = vld [vmem:[%s0 + $0x1c] sm:$0xf]
  %v23 = vld [vmem:[%s0 + $0x20] sm:$0xf]
  %v24 = vld [vmem:[%s0 + $0x24] sm:$0xf]
  %v25 = vld [vmem:[%s0 + $0x28] sm:$0xf]
  %v26 = vld [vmem:[%s0 + $0x2c] sm:$0xf]
  %v27 = vld [vmem:[%s0 + $0x30] sm:$0xf]
  %v28 = vld [vmem:[%s0 + $0x34] sm:$0xf]
  %v29 = vld [vmem:[%s0 + $0x38] sm:$0xf]
  %v30 = vld [vmem:[%s0 + $0x3c] sm:$0xf]
  %v31 = vld [vmem:[%s1] sm:$0xf]
  %v32 = vld [vmem:[%s1 + $0x4] sm:$0xf]
  %v33 = vld [vmem:[%s1 + $0x8] sm:$0xf]
  %v34 = vld [vmem:[%s1 + $0xc] sm:$0xf]
  %v35 = vld [vmem:[%s2] sm:$0x1]
  %v37 = vperm.slane %v35, 0
  %v55 = vunpack.c.l.b16 %v15
  %v56 = vunpack.c.l.b16 %v16
  %v57 = vunpack.c.l.b16 %v17
  %v58 = vunpack.c.l.b16 %v18
  %v59 = vunpack.c.l.b16 %v19
  %v60 = vunpack.c.l.b16 %v20
  %v61 = vunpack.c.l.b16 %v21
  %v62 = vunpack.c.l.b16 %v22
  %v63 = vunpack.c.l.b16 %v23
  %v64 = vunpack.c.l.b16 %v24
  %v65 = vunpack.c.l.b16 %v25
  %v66 = vunpack.c.l.b16 %v26
  %v67 = vunpack.c.l.b16 %v27
  %v68 = vunpack.c.l.b16 %v28
  %v69 = vunpack.c.l.b16 %v29
  %v70 = vunpack.c.l.b16 %v30
  %v71 = vpack.c.b16 %v56, %v55
  %v72 = vpack.c.b16 %v58, %v57
  %v73 = vpack.c.b16 %v60, %v59
  %v74 = vpack.c.b16 %v62, %v61
  %v75 = vpack.c.b16 %v64, %v63
  %v76 = vpack.c.b16 %v66, %v65
  %v77 = vpack.c.b16 %v68, %v67
  %v78 = vpack.c.b16 %v70, %v69
  %v83 = vunpack.c.l.b16 %v31
  %v84 = vunpack.c.l.b16 %v32
  %v85 = vunpack.c.l.b16 %v33
  %v86 = vunpack.c.l.b16 %v34
  %v87 = vpack.c.b16 %v84, %v83
  %v88 = vpack.c.b16 %v86, %v85
  %vm91 = vcmask 261120
  %v93 = vsel %vm91, %v71, 0
  %v96 = vsel %vm91, %v72, 0
  %v99 = vsel %vm91, %v73, 0
  %v102 = vsel %vm91, %v74, 0
  %v105 = vsel %vm91, %v75, 0
  %v108 = vsel %vm91, %v76, 0
  %v111 = vsel %vm91, %v77, 0
  %v114 = vsel %vm91, %v78, 0
  %116 = vmatpush.bf16.msra.mxu0 0
  %117 = vmatpush.bf16.msra.mxu0 0
  %118 = vmatpush.bf16.msra.mxu0 0
  %119 = vmatpush.bf16.msra.mxu0 0
  %120 = vmatpush.bf16.msra.mxu0 0
  %121 = vmatpush.bf16.msra.mxu0 0
  %122 = vmatpush.bf16.msra.mxu0 %v88
  %123 = vmatpush.bf16.msra.mxu0 %v87
  %124 = vmatmul.bf16.gmra.mxu0 %v93
  %v125 = vpop.f32.mrf.mxu0
  %v126 = vadd.f32 %v37, %v125
  %v127 = vpop.f32.mrf.mxu0
  %v128 = vadd.f32 %v37, %v127
  %129 = vmatmul.bf16.gmra.mxu0 %v96
  %v130 = vpop.f32.mrf.mxu0
  %v131 = vadd.f32 %v37, %v130
  %v132 = vpop.f32.mrf.mxu0
  %v133 = vadd.f32 %v37, %v132
  %134 = vmatmul.bf16.gmra.mxu0 %v99
  %v135 = vpop.f32.mrf.mxu0
  %v136 = vadd.f32 %v37, %v135
  %v137 = vpop.f32.mrf.mxu0
  %v138 = vadd.f32 %v37, %v137
  %139 = vmatmul.bf16.gmra.mxu0 %v102
  %v140 = vpop.f32.mrf.mxu0
  %v141 = vadd.f32 %v37, %v140
  %v142 = vpop.f32.mrf.mxu0
  %v143 = vadd.f32 %v37, %v142
  %144 = vmatmul.bf16.gmra.mxu0 %v105
  %v145 = vpop.f32.mrf.mxu0
  %v146 = vadd.f32 %v37, %v145
  %v147 = vpop.f32.mrf.mxu0
  %v148 = vadd.f32 %v37, %v147
  %149 = vmatmul.bf16.gmra.mxu0 %v108
  %v150 = vpop.f32.mrf.mxu0
  %v151 = vadd.f32 %v37, %v150
  %v152 = vpop.f32.mrf.mxu0
  %v153 = vadd.f32 %v37, %v152
  %154 = vmatmul.bf16.gmra.mxu0 %v111
  %v155 = vpop.f32.mrf.mxu0
  %v156 = vadd.f32 %v37, %v155
  %v157 = vpop.f32.mrf.mxu0
  %v158 = vadd.f32 %v37, %v157
  %159 = vmatmul.bf16.gmra.mxu0 %v114
  %v160 = vpop.f32.mrf.mxu0
  %v161 = vadd.f32 %v37, %v160
  %v162 = vpop.f32.mrf.mxu0
  %v163 = vadd.f32 %v37, %v162
  %164 = vdwg.mxu0
  %vm165 = vcmask 523264
  %166 = vst.msk [vmem:[%s3] sm:$0xff] %vm165, %v126
  %167 = vst.msk [vmem:[%s3 + $0x8] sm:$0xff] %vm165, %v128
  %168 = vst.msk [vmem:[%s3 + $0x10] sm:$0xff] %vm165, %v131
  %169 = vst.msk [vmem:[%s3 + $0x18] sm:$0xff] %vm165, %v133
  %170 = vst.msk [vmem:[%s3 + $0x20] sm:$0xff] %vm165, %v136
  %171 = vst.msk [vmem:[%s3 + $0x28] sm:$0xff] %vm165, %v138
  %172 = vst.msk [vmem:[%s3 + $0x30] sm:$0xff] %vm165, %v141
  %173 = vst.msk [vmem:[%s3 + $0x38] sm:$0xff] %vm165, %v143
  %174 = vst.msk [vmem:[%s3 + $0x40] sm:$0xff] %vm165, %v146
  %175 = vst.msk [vmem:[%s3 + $0x48] sm:$0xff] %vm165, %v148
  %176 = vst.msk [vmem:[%s3 + $0x50] sm:$0xff] %vm165, %v151
  %177 = vst.msk [vmem:[%s3 + $0x58] sm:$0xff] %vm165, %v153
  %178 = vst.msk [vmem:[%s3 + $0x60] sm:$0xff] %vm165, %v156
  %179 = vst.msk [vmem:[%s3 + $0x68] sm:$0xff] %vm165, %v158
  %180 = vst.msk [vmem:[%s3 + $0x70] sm:$0xff] %vm165, %v161
  %181 = vst.msk [vmem:[%s3 + $0x78] sm:$0xff] %vm165, %v163
  // Predicated region
  $region14: #{basic_block_forward.4} parent=0 // pred_check
    _
  $region15: #{basic_block_forward.4} parent=0 // pred_check_branch
    %183 = sbr.rel (0) target = $region17
  $region16: #{basic_block_forward.4} parent=0 // pred_region
    _
  $region17: #{basic_block_forward.4} parent=0 // pred_fallthru
    _
  // Predicated region
  $region18: #{basic_block_forward.4} parent=0 // pred_check
    _
  $region19: #{basic_block_forward.4} parent=0 // pred_check_branch
    %185 = sbr.rel (0) target = $region21
  $region20: #{basic_block_forward.4} parent=0 // pred_region
    _
  $region21: #{basic_block_forward.4} parent=0 // pred_fallthru
    _

// kernel: basic_block_forward.3
$region0: #{basic_block_forward.3}
  #allocation0 [shape = 'u32[]', space=smem, size = 0x4, offset = 0x4, fixed_abs, tag = 'smem constant byte address 0x4 - core index']
  #allocation1 [shape = 'u32[72,128]{1,0:T(1,128)}', space=vmem, size = 0x9000, scoped, tag = 'internal scratch']
  %s0 = inlined_call_operand.vmem [shape: bf16[128,288], index: 0, kind: input, shape index: {}]
  %s1 = inlined_call_operand.vmem [shape: bf16[288,64], index: 1, kind: input, shape index: {}]
  %s2 = inlined_call_operand.vmem [shape: f32[1,64], index: 2, kind: input, shape index: {}]
  %s3 = inlined_call_operand.vmem [shape: f32[128,64], index: 3, kind: output, shape index: {}]
  %s4 = sld [smem:[#allocation0]]
  $region22: #{basic_block_forward.3} parent=0
    _
  %s6 = ssub.s32 1, %s4
  %s7 = scalar_select 0, %s6, %s4
  // Predicated region
  $region2: #{basic_block_forward.3} parent=0 // pred_check
    _
  $region3: #{basic_block_forward.3} parent=0 // pred_check_branch
    %9 = sbr.rel (0) target = $region5
  $region4: #{basic_block_forward.3} parent=0 // pred_region
    _
  $region5: #{basic_block_forward.3} parent=0 // pred_fallthru
    _
  // Predicated region
  $region6: #{basic_block_forward.3} parent=0 // pred_check
    _
  $region7: #{basic_block_forward.3} parent=0 // pred_check_branch
    %11 = sbr.rel (0) target = $region9
  $region8: #{basic_block_forward.3} parent=0 // pred_region
    _
  $region9: #{basic_block_forward.3} parent=0 // pred_fallthru
    _
  // Predicated region
  $region10: #{basic_block_forward.3} parent=0 // pred_check
    _
  $region11: #{basic_block_forward.3} parent=0 // pred_check_branch
    %13 = sbr.rel (0) target = $region13
  $region12: #{basic_block_forward.3} parent=0 // pred_region
    _
  $region13: #{basic_block_forward.3} parent=0 // pred_fallthru
    _
  %v15 = vld [vmem:[%s0] sm:$0xff]
  %v16 = vld [vmem:[%s0 + $0x8] sm:$0xf]
  %v17 = vld [vmem:[%s0 + $0xc] sm:$0xff]
  %v18 = vld [vmem:[%s0 + $0x14] sm:$0xf]
  %v19 = vld [vmem:[%s0 + $0x18] sm:$0xff]
  %v20 = vld [vmem:[%s0 + $0x20] sm:$0xf]
  %v21 = vld [vmem:[%s0 + $0x24] sm:$0xff]
  %v22 = vld [vmem:[%s0 + $0x2c] sm:$0xf]
  %v23 = vld [vmem:[%s0 + $0x30] sm:$0xff]
  %v24 = vld [vmem:[%s0 + $0x38] sm:$0xf]
  %v25 = vld [vmem:[%s0 + $0x3c] sm:$0xff]
  %v26 = vld [vmem:[%s0 + $0x44] sm:$0xf]
  %v27 = vld [vmem:[%s0 + $0x48] sm:$0xff]
  %v28 = vld [vmem:[%s0 + $0x50] sm:$0xf]
  %v29 = vld [vmem:[%s0 + $0x54] sm:$0xff]
  %v30 = vld [vmem:[%s0 + $0x5c] sm:$0xf]
  %v31 = vld [vmem:[%s0 + $0x60] sm:$0xff]
  %v32 = vld [vmem:[%s0 + $0x68] sm:$0xf]
  %v33 = vld [vmem:[%s0 + $0x6c] sm:$0xff]
  %v34 = vld [vmem:[%s0 + $0x74] sm:$0xf]
  %v35 = vld [vmem:[%s0 + $0x78] sm:$0xff]
  %v36 = vld [vmem:[%s0 + $0x80] sm:$0xf]
  %v37 = vld [vmem:[%s0 + $0x84] sm:$0xff]
  %v38 = vld [vmem:[%s0 + $0x8c] sm:$0xf]
  %v39 = vld [vmem:[%s0 + $0x90] sm:$0xff]
  %v40 = vld [vmem:[%s0 + $0x98] sm:$0xf]
  %v41 = vld [vmem:[%s0 + $0x9c] sm:$0xff]
  %v42 = vld [vmem:[%s0 + $0xa4] sm:$0xf]
  %v43 = vld [vmem:[%s0 + $0xa8] sm:$0xff]
  %v44 = vld [vmem:[%s0 + $0xb0] sm:$0xf]
  %v45 = vld [vmem:[%s0 + $0xb4] sm:$0xff]
  %v46 = vld [vmem:[%s0 + $0xbc] sm:$0xf]
  %v47 = vld [vmem:[%s1] sm:$0xf]
  %v48 = vld [vmem:[%s1 + $0x4] sm:$0xf]
  %v49 = vld [vmem:[%s1 + $0x8] sm:$0xf]
  %v50 = vld [vmem:[%s1 + $0xc] sm:$0xf]
  %v51 = vld [vmem:[%s1 + $0x10] sm:$0xf]
  %v52 = vld [vmem:[%s1 + $0x14] sm:$0xf]
  %v53 = vld [vmem:[%s1 + $0x18] sm:$0xf]
  %v54 = vld [vmem:[%s1 + $0x1c] sm:$0xf]
  %v55 = vld [vmem:[%s1 + $0x20] sm:$0xf]
  %v56 = vld [vmem:[%s1 + $0x24] sm:$0xf]
  %v57 = vld [vmem:[%s1 + $0x28] sm:$0xf]
  %v58 = vld [vmem:[%s1 + $0x2c] sm:$0xf]
  %v59 = vld [vmem:[%s1 + $0x30] sm:$0xf]
  %v60 = vld [vmem:[%s1 + $0x34] sm:$0xf]
  %v61 = vld [vmem:[%s1 + $0x38] sm:$0xf]
  %v62 = vld [vmem:[%s1 + $0x3c] sm:$0xf]
  %v63 = vld [vmem:[%s1 + $0x40] sm:$0xf]
  %v64 = vld [vmem:[%s1 + $0x44] sm:$0xf]
  %v65 = vld [vmem:[%s1 + $0x48] sm:$0xf]
  %v66 = vld [vmem:[%s1 + $0x4c] sm:$0xf]
  %v67 = vld [vmem:[%s1 + $0x50] sm:$0xf]
  %v68 = vld [vmem:[%s1 + $0x54] sm:$0xf]
  %v69 = vld [vmem:[%s1 + $0x58] sm:$0xf]
  %v70 = vld [vmem:[%s1 + $0x5c] sm:$0xf]
  %v71 = vld [vmem:[%s1 + $0x60] sm:$0xf]
  %v72 = vld [vmem:[%s1 + $0x64] sm:$0xf]
  %v73 = vld [vmem:[%s1 + $0x68] sm:$0xf]
  %v74 = vld [vmem:[%s1 + $0x6c] sm:$0xf]
  %v75 = vld [vmem:[%s1 + $0x70] sm:$0xf]
  %v76 = vld [vmem:[%s1 + $0x74] sm:$0xf]
  %v77 = vld [vmem:[%s1 + $0x78] sm:$0xf]
  %v78 = vld [vmem:[%s1 + $0x7c] sm:$0xf]
  %v79 = vld [vmem:[%s1 + $0x80] sm:$0xf]
  %v80 = vld [vmem:[%s1 + $0x84] sm:$0xf]
  %v81 = vld [vmem:[%s1 + $0x88] sm:$0xf]
  %v82 = vld [vmem:[%s1 + $0x8c] sm:$0xf]
  %v83 = vld [vmem:[%s2] sm:$0x1]
  %v85 = vperm.slane %v83, 0
  %v119 = vunpack.c.l.b16 %v15
  %v120 = vunpack.c.h.b16 %v15
  %v121 = vunpack.c.l.b16 %v16
  %v122 = vunpack.c.l.b16 %v17
  %v123 = vunpack.c.h.b16 %v17
  %v124 = vunpack.c.l.b16 %v18
  %v125 = vunpack.c.l.b16 %v19
  %v126 = vunpack.c.h.b16 %v19
  %v127 = vunpack.c.l.b16 %v20
  %v128 = vunpack.c.l.b16 %v21
  %v129 = vunpack.c.h.b16 %v21
  %v130 = vunpack.c.l.b16 %v22
  %v131 = vunpack.c.l.b16 %v23
  %v132 = vunpack.c.h.b16 %v23
  %v133 = vunpack.c.l.b16 %v24
  %v134 = vunpack.c.l.b16 %v25
  %v135 = vunpack.c.h.b16 %v25
  %v136 = vunpack.c.l.b16 %v26
  %v137 = vunpack.c.l.b16 %v27
  %v138 = vunpack.c.h.b16 %v27
  %v139 = vunpack.c.l.b16 %v28
  %v140 = vunpack.c.l.b16 %v29
  %v141 = vunpack.c.h.b16 %v29
  %v142 = vunpack.c.l.b16 %v30
  %v143 = vunpack.c.l.b16 %v31
  %v144 = vunpack.c.h.b16 %v31
  %v145 = vunpack.c.l.b16 %v32
  %v146 = vunpack.c.l.b16 %v33
  %v147 = vunpack.c.h.b16 %v33
  %v148 = vunpack.c.l.b16 %v34
  %v149 = vunpack.c.l.b16 %v35
  %v150 = vunpack.c.h.b16 %v35
  %v151 = vunpack.c.l.b16 %v36
  %v152 = vunpack.c.l.b16 %v37
  %v153 = vunpack.c.h.b16 %v37
  %v154 = vunpack.c.l.b16 %v38
  %v155 = vunpack.c.l.b16 %v39
  %v156 = vunpack.c.h.b16 %v39
  %v157 = vunpack.c.l.b16 %v40
  %v158 = vunpack.c.l.b16 %v41
  %v159 = vunpack.c.h.b16 %v41
  %v160 = vunpack.c.l.b16 %v42
  %v161 = vunpack.c.l.b16 %v43
  %v162 = vunpack.c.h.b16 %v43
  %v163 = vunpack.c.l.b16 %v44
  %v164 = vunpack.c.l.b16 %v45
  %v165 = vunpack.c.h.b16 %v45
  %v166 = vunpack.c.l.b16 %v46
  %v167 = vpack.c.b16 %v122, %v119
  %v168 = vpack.c.b16 %v123, %v120
  %v169 = vpack.c.b16 %v124, %v121
  %v170 = vpack.c.b16 %v128, %v125
  %v171 = vpack.c.b16 %v129, %v126
  %v172 = vpack.c.b16 %v130, %v127
  %v173 = vpack.c.b16 %v134, %v131
  %v174 = vpack.c.b16 %v135, %v132
  %v175 = vpack.c.b16 %v136, %v133
  %v176 = vpack.c.b16 %v140, %v137
  %v177 = vpack.c.b16 %v141, %v138
  %v178 = vpack.c.b16 %v142, %v139
  %v179 = vpack.c.b16 %v146, %v143
  %v180 = vpack.c.b16 %v147, %v144
  %v181 = vpack.c.b16 %v148, %v145
  %v182 = vpack.c.b16 %v152, %v149
  %v183 = vpack.c.b16 %v153, %v150
  %v184 = vpack.c.b16 %v154, %v151
  %v185 = vpack.c.b16 %v158, %v155
  %v186 = vpack.c.b16 %v159, %v156
  %v187 = vpack.c.b16 %v160, %v157
  %v188 = vpack.c.b16 %v164, %v161
  %v189 = vpack.c.b16 %v165, %v162
  %v190 = vpack.c.b16 %v166, %v163
  %v243 = vunpack.c.l.b16 %v47
  %v244 = vunpack.c.l.b16 %v48
  %v245 = vunpack.c.l.b16 %v49
  %v246 = vunpack.c.l.b16 %v50
  %v247 = vunpack.c.l.b16 %v51
  %v248 = vunpack.c.l.b16 %v52
  %v249 = vunpack.c.l.b16 %v53
  %v250 = vunpack.c.l.b16 %v54
  %v251 = vunpack.c.l.b16 %v55
  %v252 = vunpack.c.l.b16 %v56
  %v253 = vunpack.c.l.b16 %v57
  %v254 = vunpack.c.l.b16 %v58
  %v255 = vunpack.c.l.b16 %v59
  %v256 = vunpack.c.l.b16 %v60
  %v257 = vunpack.c.l.b16 %v61
  %v258 = vunpack.c.l.b16 %v62
  %v259 = vunpack.c.l.b16 %v63
  %v260 = vunpack.c.l.b16 %v64
  %v261 = vunpack.c.l.b16 %v65
  %v262 = vunpack.c.l.b16 %v66
  %v263 = vunpack.c.l.b16 %v67
  %v264 = vunpack.c.l.b16 %v68
  %v265 = vunpack.c.l.b16 %v69
  %v266 = vunpack.c.l.b16 %v70
  %v267 = vunpack.c.l.b16 %v71
  %v268 = vunpack.c.l.b16 %v72
  %v269 = vunpack.c.l.b16 %v73
  %v270 = vunpack.c.l.b16 %v74
  %v271 = vunpack.c.l.b16 %v75
  %v272 = vunpack.c.l.b16 %v76
  %v273 = vunpack.c.l.b16 %v77
  %v274 = vunpack.c.l.b16 %v78
  %v275 = vunpack.c.l.b16 %v79
  %v276 = vunpack.c.l.b16 %v80
  %v277 = vunpack.c.l.b16 %v81
  %v278 = vunpack.c.l.b16 %v82
  %v279 = vpack.c.b16 %v244, %v243
  %v280 = vpack.c.b16 %v246, %v245
  %v281 = vpack.c.b16 %v248, %v247
  %v282 = vpack.c.b16 %v250, %v249
  %v283 = vpack.c.b16 %v252, %v251
  %v284 = vpack.c.b16 %v254, %v253
  %v285 = vpack.c.b16 %v256, %v255
  %v286 = vpack.c.b16 %v258, %v257
  %v287 = vpack.c.b16 %v260, %v259
  %v288 = vpack.c.b16 %v262, %v261
  %v289 = vpack.c.b16 %v264, %v263
  %v290 = vpack.c.b16 %v266, %v265
  %v291 = vpack.c.b16 %v268, %v267
  %v292 = vpack.c.b16 %v270, %v269
  %v293 = vpack.c.b16 %v272, %v271
  %v294 = vpack.c.b16 %v274, %v273
  %v295 = vpack.c.b16 %v276, %v275
  %v296 = vpack.c.b16 %v278, %v277
  %vm315 = vcmask 261120
  %v317 = vsel %vm315, %v169, 0
  %v320 = vsel %vm315, %v172, 0
  %v323 = vsel %vm315, %v175, 0
  %v326 = vsel %vm315, %v178, 0
  %v329 = vsel %vm315, %v181, 0
  %v332 = vsel %vm315, %v184, 0
  %v335 = vsel %vm315, %v187, 0
  %v338 = vsel %vm315, %v190, 0
  %340 = vmatpush.bf16.msra.mxu0 %v286
  %341 = vmatpush.bf16.msra.mxu0 %v285
  %342 = vmatpush.bf16.msra.mxu0 %v284
  %343 = vmatpush.bf16.msra.mxu0 %v283
  %344 = vmatpush.bf16.msra.mxu0 %v282
  %345 = vmatpush.bf16.msra.mxu0 %v281
  %346 = vmatpush.bf16.msra.mxu0 %v280
  %347 = vmatpush.bf16.msra.mxu0 %v279
  %348 = vmatmul.bf16.gmra.mxu0 %v167
  %v349 = vpop.f32.mrf.mxu0
  %v350 = vadd.f32 %v85, %v349
  %v351 = vpop.f32.mrf.mxu0
  %v352 = vadd.f32 %v85, %v351
  %353 = vmatmul.bf16.gmra.mxu0 %v170
  %v354 = vpop.f32.mrf.mxu0
  %v355 = vadd.f32 %v85, %v354
  %v356 = vpop.f32.mrf.mxu0
  %v357 = vadd.f32 %v85, %v356
  %358 = vmatmul.bf16.gmra.mxu0 %v173
  %v359 = vpop.f32.mrf.mxu0
  %v360 = vadd.f32 %v85, %v359
  %v361 = vpop.f32.mrf.mxu0
  %v362 = vadd.f32 %v85, %v361
  %363 = vmatmul.bf16.gmra.mxu0 %v176
  %v364 = vpop.f32.mrf.mxu0
  %v365 = vadd.f32 %v85, %v364
  %v366 = vpop.f32.mrf.mxu0
  %v367 = vadd.f32 %v85, %v366
  %368 = vmatmul.bf16.gmra.mxu0 %v179
  %v369 = vpop.f32.mrf.mxu0
  %v370 = vadd.f32 %v85, %v369
  %v371 = vpop.f32.mrf.mxu0
  %v372 = vadd.f32 %v85, %v371
  %373 = vmatmul.bf16.gmra.mxu0 %v182
  %v374 = vpop.f32.mrf.mxu0
  %v375 = vadd.f32 %v85, %v374
  %v376 = vpop.f32.mrf.mxu0
  %v377 = vadd.f32 %v85, %v376
  %378 = vmatmul.bf16.gmra.mxu0 %v185
  %v379 = vpop.f32.mrf.mxu0
  %v380 = vadd.f32 %v85, %v379
  %v381 = vpop.f32.mrf.mxu0
  %v382 = vadd.f32 %v85, %v381
  %383 = vmatmul.bf16.gmra.mxu0 %v188
  %v384 = vpop.f32.mrf.mxu0
  %v385 = vadd.f32 %v85, %v384
  %v386 = vpop.f32.mrf.mxu0
  %v387 = vadd.f32 %v85, %v386
  %388 = vdwg.mxu0
  %389 = vmatpush.bf16.msra.mxu0 %v294
  %390 = vmatpush.bf16.msra.mxu0 %v293
  %391 = vmatpush.bf16.msra.mxu0 %v292
  %392 = vmatpush.bf16.msra.mxu0 %v291
  %393 = vmatpush.bf16.msra.mxu0 %v290
  %394 = vmatpush.bf16.msra.mxu0 %v289
  %395 = vmatpush.bf16.msra.mxu0 %v288
  %396 = vmatpush.bf16.msra.mxu0 %v287
  %397 = vmatmul.bf16.gmra.mxu0 %v168
  %v398 = vpop.f32.mrf.mxu0
  %v399 = vadd.f32 %v350, %v398
  %v400 = vpop.f32.mrf.mxu0
  %v401 = vadd.f32 %v352, %v400
  %402 = vmatmul.bf16.gmra.mxu0 %v171
  %v403 = vpop.f32.mrf.mxu0
  %v404 = vadd.f32 %v355, %v403
  %v405 = vpop.f32.mrf.mxu0
  %v406 = vadd.f32 %v357, %v405
  %407 = vmatmul.bf16.gmra.mxu0 %v174
  %v408 = vpop.f32.mrf.mxu0
  %v409 = vadd.f32 %v360, %v408
  %v410 = vpop.f32.mrf.mxu0
  %v411 = vadd.f32 %v362, %v410
  %412 = vmatmul.bf16.gmra.mxu0 %v177
  %v413 = vpop.f32.mrf.mxu0
  %v414 = vadd.f32 %v365, %v413
  %v415 = vpop.f32.mrf.mxu0
  %v416 = vadd.f32 %v367, %v415
  %417 = vmatmul.bf16.gmra.mxu0 %v180
  %v418 = vpop.f32.mrf.mxu0
  %v419 = vadd.f32 %v370, %v418
  %v420 = vpop.f32.mrf.mxu0
  %v421 = vadd.f32 %v372, %v420
  %422 = vmatmul.bf16.gmra.mxu0 %v183
  %v423 = vpop.f32.mrf.mxu0
  %v424 = vadd.f32 %v375, %v423
  %v425 = vpop.f32.mrf.mxu0
  %v426 = vadd.f32 %v377, %v425
  %427 = vmatmul.bf16.gmra.mxu0 %v186
  %v428 = vpop.f32.mrf.mxu0
  %v429 = vadd.f32 %v380, %v428
  %v430 = vpop.f32.mrf.mxu0
  %v431 = vadd.f32 %v382, %v430
  %432 = vmatmul.bf16.gmra.mxu0 %v189
  %v433 = vpop.f32.mrf.mxu0
  %v434 = vadd.f32 %v385, %v433
  %v435 = vpop.f32.mrf.mxu0
  %v436 = vadd.f32 %v387, %v435
  %437 = vdwg.mxu0
  %438 = vmatpush.bf16.msra.mxu0 0
  %439 = vmatpush.bf16.msra.mxu0 0
  %440 = vmatpush.bf16.msra.mxu0 0
  %441 = vmatpush.bf16.msra.mxu0 0
  %442 = vmatpush.bf16.msra.mxu0 0
  %443 = vmatpush.bf16.msra.mxu0 0
  %444 = vmatpush.bf16.msra.mxu0 %v296
  %445 = vmatpush.bf16.msra.mxu0 %v295
  %446 = vmatmul.bf16.gmra.mxu0 %v317
  %v447 = vpop.f32.mrf.mxu0
  %v448 = vadd.f32 %v399, %v447
  %v449 = vpop.f32.mrf.mxu0
  %v450 = vadd.f32 %v401, %v449
  %451 = vmatmul.bf16.gmra.mxu0 %v320
  %v452 = vpop.f32.mrf.mxu0
  %v453 = vadd.f32 %v404, %v452
  %v454 = vpop.f32.mrf.mxu0
  %v455 = vadd.f32 %v406, %v454
  %456 = vmatmul.bf16.gmra.mxu0 %v323
  %v457 = vpop.f32.mrf.mxu0
  %v458 = vadd.f32 %v409, %v457
  %v459 = vpop.f32.mrf.mxu0
  %v460 = vadd.f32 %v411, %v459
  %461 = vmatmul.bf16.gmra.mxu0 %v326
  %v462 = vpop.f32.mrf.mxu0
  %v463 = vadd.f32 %v414, %v462
  %v464 = vpop.f32.mrf.mxu0
  %v465 = vadd.f32 %v416, %v464
  %466 = vmatmul.bf16.gmra.mxu0 %v329
  %v467 = vpop.f32.mrf.mxu0
  %v468 = vadd.f32 %v419, %v467
  %v469 = vpop.f32.mrf.mxu0
  %v470 = vadd.f32 %v421, %v469
  %471 = vmatmul.bf16.gmra.mxu0 %v332
  %v472 = vpop.f32.mrf.mxu0
  %v473 = vadd.f32 %v424, %v472
  %v474 = vpop.f32.mrf.mxu0
  %v475 = vadd.f32 %v426, %v474
  %476 = vmatmul.bf16.gmra.mxu0 %v335
  %v477 = vpop.f32.mrf.mxu0
  %v478 = vadd.f32 %v429, %v477
  %v479 = vpop.f32.mrf.mxu0
  %v480 = vadd.f32 %v431, %v479
  %481 = vmatmul.bf16.gmra.mxu0 %v338
  %v482 = vpop.f32.mrf.mxu0
  %v483 = vadd.f32 %v434, %v482
  %v484 = vpop.f32.mrf.mxu0
  %v485 = vadd.f32 %v436, %v484
  %486 = vdwg.mxu0
  %v487 = vmax.f32 %v448, 0.0
  %v488 = vmax.f32 %v450, 0.0
  %v489 = vmax.f32 %v453, 0.0
  %v490 = vmax.f32 %v455, 0.0
  %v491 = vmax.f32 %v458, 0.0
  %v492 = vmax.f32 %v460, 0.0
  %v493 = vmax.f32 %v463, 0.0
  %v494 = vmax.f32 %v465, 0.0
  %v495 = vmax.f32 %v468, 0.0
  %v496 = vmax.f32 %v470, 0.0
  %v497 = vmax.f32 %v473, 0.0
  %v498 = vmax.f32 %v475, 0.0
  %v499 = vmax.f32 %v478, 0.0
  %v500 = vmax.f32 %v480, 0.0
  %v501 = vmax.f32 %v483, 0.0
  %v502 = vmax.f32 %v485, 0.0
  %vm503 = vcmask 523264
  %504 = vst.msk [vmem:[%s3] sm:$0xff] %vm503, %v487
  %505 = vst.msk [vmem:[%s3 + $0x8] sm:$0xff] %vm503, %v488
  %506 = vst.msk [vmem:[%s3 + $0x10] sm:$0xff] %vm503, %v489
  %507 = vst.msk [vmem:[%s3 + $0x18] sm:$0xff] %vm503, %v490
  %508 = vst.msk [vmem:[%s3 + $0x20] sm:$0xff] %vm503, %v491
  %509 = vst.msk [vmem:[%s3 + $0x28] sm:$0xff] %vm503, %v492
  %510 = vst.msk [vmem:[%s3 + $0x30] sm:$0xff] %vm503, %v493
  %511 = vst.msk [vmem:[%s3 + $0x38] sm:$0xff] %vm503, %v494
  %512 = vst.msk [vmem:[%s3 + $0x40] sm:$0xff] %vm503, %v495
  %513 = vst.msk [vmem:[%s3 + $0x48] sm:$0xff] %vm503, %v496
  %514 = vst.msk [vmem:[%s3 + $0x50] sm:$0xff] %vm503, %v497
  %515 = vst.msk [vmem:[%s3 + $0x58] sm:$0xff] %vm503, %v498
  %516 = vst.msk [vmem:[%s3 + $0x60] sm:$0xff] %vm503, %v499
  %517 = vst.msk [vmem:[%s3 + $0x68] sm:$0xff] %vm503, %v500
  %518 = vst.msk [vmem:[%s3 + $0x70] sm:$0xff] %vm503, %v501
  %519 = vst.msk [vmem:[%s3 + $0x78] sm:$0xff] %vm503, %v502
  // Predicated region
  $region14: #{basic_block_forward.3} parent=0 // pred_check
    _
  $region15: #{basic_block_forward.3} parent=0 // pred_check_branch
    %521 = sbr.rel (0) target = $region17
  $region16: #{basic_block_forward.3} parent=0 // pred_region
    _
  $region17: #{basic_block_forward.3} parent=0 // pred_fallthru
    _
  // Predicated region
  $region18: #{basic_block_forward.3} parent=0 // pred_check
    _
  $region19: #{basic_block_forward.3} parent=0 // pred_check_branch
    %523 = sbr.rel (0) target = $region21
  $region20: #{basic_block_forward.3} parent=0 // pred_region
    _
  $region21: #{basic_block_forward.3} parent=0 // pred_fallthru
    _

// kernel: basic_block_forward.5
$region0: #{basic_block_forward.5}
  #allocation0 [shape = 'u32[]', space=smem, size = 0x4, offset = 0x4, fixed_abs, tag = 'smem constant byte address 0x4 - core index']
  #allocation1 [shape = 'u32[72,128]{1,0:T(1,128)}', space=vmem, size = 0x9000, scoped, tag = 'internal scratch']
  %s0 = inlined_call_operand.vmem [shape: bf16[128,576], index: 0, kind: input, shape index: {}]
  %s1 = inlined_call_operand.vmem [shape: bf16[576,64], index: 1, kind: input, shape index: {}]
  %s2 = inlined_call_operand.vmem [shape: f32[1,64], index: 2, kind: input, shape index: {}]
  %s3 = inlined_call_operand.vmem [shape: f32[128,64], index: 3, kind: input, shape index: {}]
  %s4 = inlined_call_operand.hbm [shape: f32[128,64], index: 4, kind: output, shape index: {}]
  %s5 = sld [smem:[#allocation0]]
  $region26: #{basic_block_forward.5} parent=0
    _
  %s7 = ssub.s32 1, %s5
  %s8 = scalar_select 0, %s7, %s5
  $region1: #{basic_block_forward.5} parent=0
    #allocation2 [shape = 'u8[65536]{0}', space=vmem, size = 0x10000, scoped, tag = 'output window, operand 0, single buffered']
    #allocation3 [shape = 's32[1]{0}', space=sflag, size = 0x4, scoped, tag = 'scoped memory for basic_block_forward.5']
    %9 = vsyncpa [#allocation3], 0
    // Predicated region
    $region2: #{basic_block_forward.5} parent=1 // pred_check
      _
    $region3: #{basic_block_forward.5} parent=1 // pred_check_branch
      %11 = sbr.rel (0) target = $region5
    $region4: #{basic_block_forward.5} parent=1 // pred_region
      _
    $region5: #{basic_block_forward.5} parent=1 // pred_fallthru
      _
    // Predicated region
    $region6: #{basic_block_forward.5} parent=1 // pred_check
      _
    $region7: #{basic_block_forward.5} parent=1 // pred_check_branch
      %13 = sbr.rel (0) target = $region9
    $region8: #{basic_block_forward.5} parent=1 // pred_region
      _
    $region9: #{basic_block_forward.5} parent=1 // pred_fallthru
      _
    // Predicated region
    $region10: #{basic_block_forward.5} parent=1 // pred_check
      _
    $region11: #{basic_block_forward.5} parent=1 // pred_check_branch
      %15 = sbr.rel (0) target = $region13
    $region12: #{basic_block_forward.5} parent=1 // pred_region
      _
    $region13: #{basic_block_forward.5} parent=1 // pred_fallthru
      _
    // Predicated region
    $region14: #{basic_block_forward.5} parent=1 // pred_check
      _
    $region15: #{basic_block_forward.5} parent=1 // pred_check_branch
      %17 = sbr.rel (0) target = $region17
    $region16: #{basic_block_forward.5} parent=1 // pred_region
      _
    $region17: #{basic_block_forward.5} parent=1 // pred_fallthru
      _
    %v19 = vld [vmem:[%s0] sm:$0xff]
    %v20 = vld [vmem:[%s0 + $0x8] sm:$0xff]
    %v21 = vld [vmem:[%s0 + $0x10] sm:$0xf]
    %v22 = vld [vmem:[%s0 + $0x14] sm:$0xff]
    %v23 = vld [vmem:[%s0 + $0x1c] sm:$0xff]
    %v24 = vld [vmem:[%s0 + $0x24] sm:$0xf]
    %v25 = vld [vmem:[%s0 + $0x28] sm:$0xff]
    %v26 = vld [vmem:[%s0 + $0x30] sm:$0xff]
    %v27 = vld [vmem:[%s0 + $0x38] sm:$0xf]
    %v28 = vld [vmem:[%s0 + $0x3c] sm:$0xff]
    %v29 = vld [vmem:[%s0 + $0x44] sm:$0xff]
    %v30 = vld [vmem:[%s0 + $0x4c] sm:$0xf]
    %v31 = vld [vmem:[%s0 + $0x50] sm:$0xff]
    %v32 = vld [vmem:[%s0 + $0x58] sm:$0xff]
    %v33 = vld [vmem:[%s0 + $0x60] sm:$0xf]
    %v34 = vld [vmem:[%s0 + $0x64] sm:$0xff]
    %v35 = vld [vmem:[%s0 + $0x6c] sm:$0xff]
    %v36 = vld [vmem:[%s0 + $0x74] sm:$0xf]
    %v37 = vld [vmem:[%s0 + $0x78] sm:$0xff]
    %v38 = vld [vmem:[%s0 + $0x80] sm:$0xff]
    %v39 = vld [vmem:[%s0 + $0x88] sm:$0xf]
    %v40 = vld [vmem:[%s0 + $0x8c] sm:$0xff]
    %v41 = vld [vmem:[%s0 + $0x94] sm:$0xff]
    %v42 = vld [vmem:[%s0 + $0x9c] sm:$0xf]
    %v43 = vld [vmem:[%s0 + $0xa0] sm:$0xff]
    %v44 = vld [vmem:[%s0 + $0xa8] sm:$0xff]
    %v45 = vld [vmem:[%s0 + $0xb0] sm:$0xf]
    %v46 = vld [vmem:[%s0 + $0xb4] sm:$0xff]
    %v47 = vld [vmem:[%s0 + $0xbc] sm:$0xff]
    %v48 = vld [vmem:[%s0 + $0xc4] sm:$0xf]
    %v49 = vld [vmem:[%s0 + $0xc8] sm:$0xff]
    %v50 = vld [vmem:[%s0 + $0xd0] sm:$0xff]
    %v51 = vld [vmem:[%s0 + $0xd8] sm:$0xf]
    %v52 = vld [vmem:[%s0 + $0xdc] sm:$0xff]
    %v53 = vld [vmem:[%s0 + $0xe4] sm:$0xff]
    %v54 = vld [vmem:[%s0 + $0xec] sm:$0xf]
    %v55 = vld [vmem:[%s0 + $0xf0] sm:$0xff]
    %v56 = vld [vmem:[%s0 + $0xf8] sm:$0xff]
    %v57 = vld [vmem:[%s0 + $0x100] sm:$0xf]
    %v58 = vld [vmem:[%s0 + $0x104] sm:$0xff]
    %v59 = vld [vmem:[%s0 + $0x10c] sm:$0xff]
    %v60 = vld [vmem:[%s0 + $0x114] sm:$0xf]
    %v61 = vld [vmem:[%s0 + $0x118] sm:$0xff]
    %v62 = vld [vmem:[%s0 + $0x120] sm:$0xff]
    %v63 = vld [vmem:[%s0 + $0x128] sm:$0xf]
    %v64 = vld [vmem:[%s0 + $0x12c] sm:$0xff]
    %v65 = vld [vmem:[%s0 + $0x134] sm:$0xff]
    %v66 = vld [vmem:[%s0 + $0x13c] sm:$0xf]
    %v67 = vld [vmem:[%s1] sm:$0xf]
    %v68 = vld [vmem:[%s1 + $0x4] sm:$0xf]
    %v69 = vld [vmem:[%s1 + $0x8] sm:$0xf]
    %v70 = vld [vmem:[%s1 + $0xc] sm:$0xf]
    %v71 = vld [vmem:[%s1 + $0x10] sm:$0xf]
    %v72 = vld [vmem:[%s1 + $0x14] sm:$0xf]
    %v73 = vld [vmem:[%s1 + $0x18] sm:$0xf]
    %v74 = vld [vmem:[%s1 + $0x1c] sm:$0xf]
    %v75 = vld [vmem:[%s1 + $0x20] sm:$0xf]
    %v76 = vld [vmem:[%s1 + $0x24] sm:$0xf]
    %v77 = vld [vmem:[%s1 + $0x28] sm:$0xf]
    %v78 = vld [vmem:[%s1 + $0x2c] sm:$0xf]
    %v79 = vld [vmem:[%s1 + $0x30] sm:$0xf]
    %v80 = vld [vmem:[%s1 + $0x34] sm:$0xf]
    %v81 = vld [vmem:[%s1 + $0x38] sm:$0xf]
    %v82 = vld [vmem:[%s1 + $0x3c] sm:$0xf]
    %v83 = vld [vmem:[%s1 + $0x40] sm:$0xf]
    %v84 = vld [vmem:[%s1 + $0x44] sm:$0xf]
    %v85 = vld [vmem:[%s1 + $0x48] sm:$0xf]
    %v86 = vld [vmem:[%s1 + $0x4c] sm:$0xf]
    %v87 = vld [vmem:[%s1 + $0x50] sm:$0xf]
    %v88 = vld [vmem:[%s1 + $0x54] sm:$0xf]
    %v89 = vld [vmem:[%s1 + $0x58] sm:$0xf]
    %v90 = vld [vmem:[%s1 + $0x5c] sm:$0xf]
    %v91 = vld [vmem:[%s1 + $0x60] sm:$0xf]
    %v92 = vld [vmem:[%s1 + $0x64] sm:$0xf]
    %v93 = vld [vmem:[%s1 + $0x68] sm:$0xf]
    %v94 = vld [vmem:[%s1 + $0x6c] sm:$0xf]
    %v95 = vld [vmem:[%s1 + $0x70] sm:$0xf]
    %v96 = vld [vmem:[%s1 + $0x74] sm:$0xf]
    %v97 = vld [vmem:[%s1 + $0x78] sm:$0xf]
    %v98 = vld [vmem:[%s1 + $0x7c] sm:$0xf]
    %v99 = vld [vmem:[%s1 + $0x80] sm:$0xf]
    %v100 = vld [vmem:[%s1 + $0x84] sm:$0xf]
    %v101 = vld [vmem:[%s1 + $0x88] sm:$0xf]
    %v102 = vld [vmem:[%s1 + $0x8c] sm:$0xf]
    %v103 = vld [vmem:[%s1 + $0x90] sm:$0xf]
    %v104 = vld [vmem:[%s1 + $0x94] sm:$0xf]
    %v105 = vld [vmem:[%s1 + $0x98] sm:$0xf]
    %v106 = vld [vmem:[%s1 + $0x9c] sm:$0xf]
    %v107 = vld [vmem:[%s1 + $0xa0] sm:$0xf]
    %v108 = vld [vmem:[%s1 + $0xa4] sm:$0xf]
    %v109 = vld [vmem:[%s1 + $0xa8] sm:$0xf]
    %v110 = vld [vmem:[%s1 + $0xac] sm:$0xf]
    %v111 = vld [vmem:[%s1 + $0xb0] sm:$0xf]
    %v112 = vld [vmem:[%s1 + $0xb4] sm:$0xf]
    %v113 = vld [vmem:[%s1 + $0xb8] sm:$0xf]
    %v114 = vld [vmem:[%s1 + $0xbc] sm:$0xf]
    %v115 = vld [vmem:[%s1 + $0xc0] sm:$0xf]
    %v116 = vld [vmem:[%s1 + $0xc4] sm:$0xf]
    %v117 = vld [vmem:[%s1 + $0xc8] sm:$0xf]
    %v118 = vld [vmem:[%s1 + $0xcc] sm:$0xf]
    %v119 = vld [vmem:[%s1 + $0xd0] sm:$0xf]
    %v120 = vld [vmem:[%s1 + $0xd4] sm:$0xf]
    %v121 = vld [vmem:[%s1 + $0xd8] sm:$0xf]
    %v122 = vld [vmem:[%s1 + $0xdc] sm:$0xf]
    %v123 = vld [vmem:[%s1 + $0xe0] sm:$0xf]
    %v124 = vld [vmem:[%s1 + $0xe4] sm:$0xf]
    %v125 = vld [vmem:[%s1 + $0xe8] sm:$0xf]
    %v126 = vld [vmem:[%s1 + $0xec] sm:$0xf]
    %v127 = vld [vmem:[%s1 + $0xf0] sm:$0xf]
    %v128 = vld [vmem:[%s1 + $0xf4] sm:$0xf]
    %v129 = vld [vmem:[%s1 + $0xf8] sm:$0xf]
    %v130 = vld [vmem:[%s1 + $0xfc] sm:$0xf]
    %v131 = vld [vmem:[%s1 + $0x100] sm:$0xf]
    %v132 = vld [vmem:[%s1 + $0x104] sm:$0xf]
    %v133 = vld [vmem:[%s1 + $0x108] sm:$0xf]
    %v134 = vld [vmem:[%s1 + $0x10c] sm:$0xf]
    %v135 = vld [vmem:[%s1 + $0x110] sm:$0xf]
    %v136 = vld [vmem:[%s1 + $0x114] sm:$0xf]
    %v137 = vld [vmem:[%s1 + $0x118] sm:$0xf]
    %v138 = vld [vmem:[%s1 + $0x11c] sm:$0xf]
    %v139 = vld [vmem:[%s2] sm:$0x1]
    %v141 = vperm.slane %v139, 0
    %v191 = vunpack.c.l.b16 %v19
    %v192 = vunpack.c.h.b16 %v19
    %v193 = vunpack.c.l.b16 %v20
    %v194 = vunpack.c.h.b16 %v20
    %v195 = vunpack.c.l.b16 %v21
    %v196 = vunpack.c.l.b16 %v22
    %v197 = vunpack.c.h.b16 %v22
    %v198 = vunpack.c.l.b16 %v23
    %v199 = vunpack.c.h.b16 %v23
    %v200 = vunpack.c.l.b16 %v24
    %v201 = vunpack.c.l.b16 %v25
    %v202 = vunpack.c.h.b16 %v25
    %v203 = vunpack.c.l.b16 %v26
    %v204 = vunpack.c.h.b16 %v26
    %v205 = vunpack.c.l.b16 %v27
    %v206 = vunpack.c.l.b16 %v28
    %v207 = vunpack.c.h.b16 %v28
    %v208 = vunpack.c.l.b16 %v29
    %v209 = vunpack.c.h.b16 %v29
    %v210 = vunpack.c.l.b16 %v30
    %v211 = vunpack.c.l.b16 %v31
    %v212 = vunpack.c.h.b16 %v31
    %v213 = vunpack.c.l.b16 %v32
    %v214 = vunpack.c.h.b16 %v32
    %v215 = vunpack.c.l.b16 %v33
    %v216 = vunpack.c.l.b16 %v34
    %v217 = vunpack.c.h.b16 %v34
    %v218 = vunpack.c.l.b16 %v35
    %v219 = vunpack.c.h.b16 %v35
    %v220 = vunpack.c.l.b16 %v36
    %v221 = vunpack.c.l.b16 %v37
    %v222 = vunpack.c.h.b16 %v37
    %v223 = vunpack.c.l.b16 %v38
    %v224 = vunpack.c.h.b16 %v38
    %v225 = vunpack.c.l.b16 %v39
    %v226 = vunpack.c.l.b16 %v40
    %v227 = vunpack.c.h.b16 %v40
    %v228 = vunpack.c.l.b16 %v41
    %v229 = vunpack.c.h.b16 %v41
    %v230 = vunpack.c.l.b16 %v42
    %v231 = vunpack.c.l.b16 %v43
    %v232 = vunpack.c.h.b16 %v43
    %v233 = vunpack.c.l.b16 %v44
    %v234 = vunpack.c.h.b16 %v44
    %v235 = vunpack.c.l.b16 %v45
    %v236 = vunpack.c.l.b16 %v46
    %v237 = vunpack.c.h.b16 %v46
    %v238 = vunpack.c.l.b16 %v47
    %v239 = vunpack.c.h.b16 %v47
    %v240 = vunpack.c.l.b16 %v48
    %v241 = vunpack.c.l.b16 %v49
    %v242 = vunpack.c.h.b16 %v49
    %v243 = vunpack.c.l.b16 %v50
    %v244 = vunpack.c.h.b16 %v50
    %v245 = vunpack.c.l.b16 %v51
    %v246 = vunpack.c.l.b16 %v52
    %v247 = vunpack.c.h.b16 %v52
    %v248 = vunpack.c.l.b16 %v53
    %v249 = vunpack.c.h.b16 %v53
    %v250 = vunpack.c.l.b16 %v54
    %v251 = vunpack.c.l.b16 %v55
    %v252 = vunpack.c.h.b16 %v55
    %v253 = vunpack.c.l.b16 %v56
    %v254 = vunpack.c.h.b16 %v56
    %v255 = vunpack.c.l.b16 %v57
    %v256 = vunpack.c.l.b16 %v58
    %v257 = vunpack.c.h.b16 %v58
    %v258 = vunpack.c.l.b16 %v59
    %v259 = vunpack.c.h.b16 %v59
    %v260 = vunpack.c.l.b16 %v60
    %v261 = vunpack.c.l.b16 %v61
    %v262 = vunpack.c.h.b16 %v61
    %v263 = vunpack.c.l.b16 %v62
    %v264 = vunpack.c.h.b16 %v62
    %v265 = vunpack.c.l.b16 %v63
    %v266 = vunpack.c.l.b16 %v64
    %v267 = vunpack.c.h.b16 %v64
    %v268 = vunpack.c.l.b16 %v65
    %v269 = vunpack.c.h.b16 %v65
    %v270 = vunpack.c.l.b16 %v66
    %v271 = vpack.c.b16 %v196, %v191
    %v272 = vpack.c.b16 %v197, %v192
    %v273 = vpack.c.b16 %v198, %v193
    %v274 = vpack.c.b16 %v199, %v194
    %v275 = vpack.c.b16 %v200, %v195
    %v276 = vpack.c.b16 %v206, %v201
    %v277 = vpack.c.b16 %v207, %v202
    %v278 = vpack.c.b16 %v208, %v203
    %v279 = vpack.c.b16 %v209, %v204
    %v280 = vpack.c.b16 %v210, %v205
    %v281 = vpack.c.b16 %v216, %v211
    %v282 = vpack.c.b16 %v217, %v212
    %v283 = vpack.c.b16 %v218, %v213
    %v284 = vpack.c.b16 %v219, %v214
    %v285 = vpack.c.b16 %v220, %v215
    %v286 = vpack.c.b16 %v226, %v221
    %v287 = vpack.c.b16 %v227, %v222
    %v288 = vpack.c.b16 %v228, %v223
    %v289 = vpack.c.b16 %v229, %v224
    %v290 = vpack.c.b16 %v230, %v225
    %v291 = vpack.c.b16 %v236, %v231
    %v292 = vpack.c.b16 %v237, %v232
    %v293 = vpack.c.b16 %v238, %v233
    %v294 = vpack.c.b16 %v239, %v234
    %v295 = vpack.c.b16 %v240, %v235
    %v296 = vpack.c.b16 %v246, %v241
    %v297 = vpack.c.b16 %v247, %v242
    %v298 = vpack.c.b16 %v248, %v243
    %v299 = vpack.c.b16 %v249, %v244
    %v300 = vpack.c.b16 %v250, %v245
    %v301 = vpack.c.b16 %v256, %v251
    %v302 = vpack.c.b16 %v257, %v252
    %v303 = vpack.c.b16 %v258, %v253
    %v304 = vpack.c.b16 %v259, %v254
    %v305 = vpack.c.b16 %v260, %v255
    %v306 = vpack.c.b16 %v266, %v261
    %v307 = vpack.c.b16 %v267, %v262
    %v308 = vpack.c.b16 %v268, %v263
    %v309 = vpack.c.b16 %v269, %v264
    %v310 = vpack.c.b16 %v270, %v265
    %v415 = vunpack.c.l.b16 %v67
    %v416 = vunpack.c.l.b16 %v68
    %v417 = vunpack.c.l.b16 %v69
    %v418 = vunpack.c.l.b16 %v70
    %v419 = vunpack.c.l.b16 %v71
    %v420 = vunpack.c.l.b16 %v72
    %v421 = vunpack.c.l.b16 %v73
    %v422 = vunpack.c.l.b16 %v74
    %v423 = vunpack.c.l.b16 %v75
    %v424 = vunpack.c.l.b16 %v76
    %v425 = vunpack.c.l.b16 %v77
    %v426 = vunpack.c.l.b16 %v78
    %v427 = vunpack.c.l.b16 %v79
    %v428 = vunpack.c.l.b16 %v80
    %v429 = vunpack.c.l.b16 %v81
    %v430 = vunpack.c.l.b16 %v82
    %v431 = vunpack.c.l.b16 %v83
    %v432 = vunpack.c.l.b16 %v84
    %v433 = vunpack.c.l.b16 %v85
    %v434 = vunpack.c.l.b16 %v86
    %v435 = vunpack.c.l.b16 %v87
    %v436 = vunpack.c.l.b16 %v88
    %v437 = vunpack.c.l.b16 %v89
    %v438 = vunpack.c.l.b16 %v90
    %v439 = vunpack.c.l.b16 %v91
    %v440 = vunpack.c.l.b16 %v92
    %v441 = vunpack.c.l.b16 %v93
    %v442 = vunpack.c.l.b16 %v94
    %v443 = vunpack.c.l.b16 %v95
    %v444 = vunpack.c.l.b16 %v96
    %v445 = vunpack.c.l.b16 %v97
    %v446 = vunpack.c.l.b16 %v98
    %v447 = vunpack.c.l.b16 %v99
    %v448 = vunpack.c.l.b16 %v100
    %v449 = vunpack.c.l.b16 %v101
    %v450 = vunpack.c.l.b16 %v102
    %v451 = vunpack.c.l.b16 %v103
    %v452 = vunpack.c.l.b16 %v104
    %v453 = vunpack.c.l.b16 %v105
    %v454 = vunpack.c.l.b16 %v106
    %v455 = vunpack.c.l.b16 %v107
    %v456 = vunpack.c.l.b16 %v108
    %v457 = vunpack.c.l.b16 %v109
    %v458 = vunpack.c.l.b16 %v110
    %v459 = vunpack.c.l.b16 %v111
    %v460 = vunpack.c.l.b16 %v112
    %v461 = vunpack.c.l.b16 %v113
    %v462 = vunpack.c.l.b16 %v114
    %v463 = vunpack.c.l.b16 %v115
    %v464 = vunpack.c.l.b16 %v116
    %v465 = vunpack.c.l.b16 %v117
    %v466 = vunpack.c.l.b16 %v118
    %v467 = vunpack.c.l.b16 %v119
    %v468 = vunpack.c.l.b16 %v120
    %v469 = vunpack.c.l.b16 %v121
    %v470 = vunpack.c.l.b16 %v122
    %v471 = vunpack.c.l.b16 %v123
    %v472 = vunpack.c.l.b16 %v124
    %v473 = vunpack.c.l.b16 %v125
    %v474 = vunpack.c.l.b16 %v126
    %v475 = vunpack.c.l.b16 %v127
    %v476 = vunpack.c.l.b16 %v128
    %v477 = vunpack.c.l.b16 %v129
    %v478 = vunpack.c.l.b16 %v130
    %v479 = vunpack.c.l.b16 %v131
    %v480 = vunpack.c.l.b16 %v132
    %v481 = vunpack.c.l.b16 %v133
    %v482 = vunpack.c.l.b16 %v134
    %v483 = vunpack.c.l.b16 %v135
    %v484 = vunpack.c.l.b16 %v136
    %v485 = vunpack.c.l.b16 %v137
    %v486 = vunpack.c.l.b16 %v138
    %v487 = vpack.c.b16 %v416, %v415
    %v488 = vpack.c.b16 %v418, %v417
    %v489 = vpack.c.b16 %v420, %v419
    %v490 = vpack.c.b16 %v422, %v421
    %v491 = vpack.c.b16 %v424, %v423
    %v492 = vpack.c.b16 %v426, %v425
    %v493 = vpack.c.b16 %v428, %v427
    %v494 = vpack.c.b16 %v430, %v429
    %v495 = vpack.c.b16 %v432, %v431
    %v496 = vpack.c.b16 %v434, %v433
    %v497 = vpack.c.b16 %v436, %v435
    %v498 = vpack.c.b16 %v438, %v437
    %v499 = vpack.c.b16 %v440, %v439
    %v500 = vpack.c.b16 %v442, %v441
    %v501 = vpack.c.b16 %v444, %v443
    %v502 = vpack.c.b16 %v446, %v445
    %v503 = vpack.c.b16 %v448, %v447
    %v504 = vpack.c.b16 %v450, %v449
    %v505 = vpack.c.b16 %v452, %v451
    %v506 = vpack.c.b16 %v454, %v453
    %v507 = vpack.c.b16 %v456, %v455
    %v508 = vpack.c.b16 %v458, %v457
    %v509 = vpack.c.b16 %v460, %v459
    %v510 = vpack.c.b16 %v462, %v461
    %v511 = vpack.c.b16 %v464, %v463
    %v512 = vpack.c.b16 %v466, %v465
    %v513 = vpack.c.b16 %v468, %v467
    %v514 = vpack.c.b16 %v470, %v469
    %v515 = vpack.c.b16 %v472, %v471
    %v516 = vpack.c.b16 %v474, %v473
    %v517 = vpack.c.b16 %v476, %v475
    %v518 = vpack.c.b16 %v478, %v477
    %v519 = vpack.c.b16 %v480, %v479
    %v520 = vpack.c.b16 %v482, %v481
    %v521 = vpack.c.b16 %v484, %v483
    %v522 = vpack.c.b16 %v486, %v485
    %vm559 = vcmask 523264
    %v561 = vsel %vm559, %v275, 0
    %v564 = vsel %vm559, %v280, 0
    %v567 = vsel %vm559, %v285, 0
    %v570 = vsel %vm559, %v290, 0
    %v573 = vsel %vm559, %v295, 0
    %v576 = vsel %vm559, %v300, 0
    %v579 = vsel %vm559, %v305, 0
    %v582 = vsel %vm559, %v310, 0
    %584 = vmatpush.bf16.msra.mxu0 %v494
    %585 = vmatpush.bf16.msra.mxu0 %v493
    %586 = vmatpush.bf16.msra.mxu0 %v492
    %587 = vmatpush.bf16.msra.mxu0 %v491
    %588 = vmatpush.bf16.msra.mxu0 %v490
    %589 = vmatpush.bf16.msra.mxu0 %v489
    %590 = vmatpush.bf16.msra.mxu0 %v488
    %591 = vmatpush.bf16.msra.mxu0 %v487
    %592 = vmatmul.bf16.gmra.mxu0 %v271
    %v593 = vpop.f32.mrf.mxu0
    %v594 = vadd.f32 %v141, %v593
    %v595 = vpop.f32.mrf.mxu0
    %v596 = vadd.f32 %v141, %v595
    %597 = vmatmul.bf16.gmra.mxu0 %v276
    %v598 = vpop.f32.mrf.mxu0
    %v599 = vadd.f32 %v141, %v598
    %v600 = vpop.f32.mrf.mxu0
    %v601 = vadd.f32 %v141, %v600
    %602 = vmatmul.bf16.gmra.mxu0 %v281
    %v603 = vpop.f32.mrf.mxu0
    %v604 = vadd.f32 %v141, %v603
    %v605 = vpop.f32.mrf.mxu0
    %v606 = vadd.f32 %v141, %v605
    %607 = vmatmul.bf16.gmra.mxu0 %v286
    %v608 = vpop.f32.mrf.mxu0
    %v609 = vadd.f32 %v141, %v608
    %v610 = vpop.f32.mrf.mxu0
    %v611 = vadd.f32 %v141, %v610
    %612 = vmatmul.bf16.gmra.mxu0 %v291
    %v613 = vpop.f32.mrf.mxu0
    %v614 = vadd.f32 %v141, %v613
    %v615 = vpop.f32.mrf.mxu0
    %v616 = vadd.f32 %v141, %v615
    %617 = vmatmul.bf16.gmra.mxu0 %v296
    %v618 = vpop.f32.mrf.mxu0
    %v619 = vadd.f32 %v141, %v618
    %v620 = vpop.f32.mrf.mxu0
    %v621 = vadd.f32 %v141, %v620
    %622 = vmatmul.bf16.gmra.mxu0 %v301
    %v623 = vpop.f32.mrf.mxu0
    %v624 = vadd.f32 %v141, %v623
    %v625 = vpop.f32.mrf.mxu0
    %v626 = vadd.f32 %v141, %v625
    %627 = vmatmul.bf16.gmra.mxu0 %v306
    %v628 = vpop.f32.mrf.mxu0
    %v629 = vadd.f32 %v141, %v628
    %v630 = vpop.f32.mrf.mxu0
    %v631 = vadd.f32 %v141, %v630
    %632 = vdwg.mxu0
    %633 = vmatpush.bf16.msra.mxu0 %v502
    %634 = vmatpush.bf16.msra.mxu0 %v501
    %635 = vmatpush.bf16.msra.mxu0 %v500
    %636 = vmatpush.bf16.msra.mxu0 %v499
    %637 = vmatpush.bf16.msra.mxu0 %v498
    %638 = vmatpush.bf16.msra.mxu0 %v497
    %639 = vmatpush.bf16.msra.mxu0 %v496
    %640 = vmatpush.bf16.msra.mxu0 %v495
    %641 = vmatmul.bf16.gmra.mxu0 %v272
    %v642 = vpop.f32.mrf.mxu0
    %v643 = vadd.f32 %v594, %v642
    %v644 = vpop.f32.mrf.mxu0
    %v645 = vadd.f32 %v596, %v644
    %646 = vmatmul.bf16.gmra.mxu0 %v277
    %v647 = vpop.f32.mrf.mxu0
    %v648 = vadd.f32 %v599, %v647
    %v649 = vpop.f32.mrf.mxu0
    %v650 = vadd.f32 %v601, %v649
    %651 = vmatmul.bf16.gmra.mxu0 %v282
    %v652 = vpop.f32.mrf.mxu0
    %v653 = vadd.f32 %v604, %v652
    %v654 = vpop.f32.mrf.mxu0
    %v655 = vadd.f32 %v606, %v654
    %656 = vmatmul.bf16.gmra.mxu0 %v287
    %v657 = vpop.f32.mrf.mxu0
    %v658 = vadd.f32 %v609, %v657
    %v659 = vpop.f32.mrf.mxu0
    %v660 = vadd.f32 %v611, %v659
    %661 = vmatmul.bf16.gmra.mxu0 %v292
    %v662 = vpop.f32.mrf.mxu0
    %v663 = vadd.f32 %v614, %v662
    %v664 = vpop.f32.mrf.mxu0
    %v665 = vadd.f32 %v616, %v664
    %666 = vmatmul.bf16.gmra.mxu0 %v297
    %v667 = vpop.f32.mrf.mxu0
    %v668 = vadd.f32 %v619, %v667
    %v669 = vpop.f32.mrf.mxu0
    %v670 = vadd.f32 %v621, %v669
    %671 = vmatmul.bf16.gmra.mxu0 %v302
    %v672 = vpop.f32.mrf.mxu0
    %v673 = vadd.f32 %v624, %v672
    %v674 = vpop.f32.mrf.mxu0
    %v675 = vadd.f32 %v626, %v674
    %676 = vmatmul.bf16.gmra.mxu0 %v307
    %v677 = vpop.f32.mrf.mxu0
    %v678 = vadd.f32 %v629, %v677
    %v679 = vpop.f32.mrf.mxu0
    %v680 = vadd.f32 %v631, %v679
    %681 = vdwg.mxu0
    %682 = vmatpush.bf16.msra.mxu0 %v510
    %683 = vmatpush.bf16.msra.mxu0 %v509
    %684 = vmatpush.bf16.msra.mxu0 %v508
    %685 = vmatpush.bf16.msra.mxu0 %v507
    %686 = vmatpush.bf16.msra.mxu0 %v506
    %687 = vmatpush.bf16.msra.mxu0 %v505
    %688 = vmatpush.bf16.msra.mxu0 %v504
    %689 = vmatpush.bf16.msra.mxu0 %v503
    %690 = vmatmul.bf16.gmra.mxu0 %v273
    %v691 = vpop.f32.mrf.mxu0
    %v692 = vadd.f32 %v643, %v691
    %v693 = vpop.f32.mrf.mxu0
    %v694 = vadd.f32 %v645, %v693
    %695 = vmatmul.bf16.gmra.mxu0 %v278
    %v696 = vpop.f32.mrf.mxu0
    %v697 = vadd.f32 %v648, %v696
    %v698 = vpop.f32.mrf.mxu0
    %v699 = vadd.f32 %v650, %v698
    %700 = vmatmul.bf16.gmra.mxu0 %v283
    %v701 = vpop.f32.mrf.mxu0
    %v702 = vadd.f32 %v653, %v701
    %v703 = vpop.f32.mrf.mxu0
    %v704 = vadd.f32 %v655, %v703
    %705 = vmatmul.bf16.gmra.mxu0 %v288
    %v706 = vpop.f32.mrf.mxu0
    %v707 = vadd.f32 %v658, %v706
    %v708 = vpop.f32.mrf.mxu0
    %v709 = vadd.f32 %v660, %v708
    %710 = vmatmul.bf16.gmra.mxu0 %v293
    %v711 = vpop.f32.mrf.mxu0
    %v712 = vadd.f32 %v663, %v711
    %v713 = vpop.f32.mrf.mxu0
    %v714 = vadd.f32 %v665, %v713
    %715 = vmatmul.bf16.gmra.mxu0 %v298
    %v716 = vpop.f32.mrf.mxu0
    %v717 = vadd.f32 %v668, %v716
    %v718 = vpop.f32.mrf.mxu0
    %v719 = vadd.f32 %v670, %v718
    %720 = vmatmul.bf16.gmra.mxu0 %v303
    %v721 = vpop.f32.mrf.mxu0
    %v722 = vadd.f32 %v673, %v721
    %v723 = vpop.f32.mrf.mxu0
    %v724 = vadd.f32 %v675, %v723
    %725 = vmatmul.bf16.gmra.mxu0 %v308
    %v726 = vpop.f32.mrf.mxu0
    %v727 = vadd.f32 %v678, %v726
    %v728 = vpop.f32.mrf.mxu0
    %v729 = vadd.f32 %v680, %v728
    %730 = vdwg.mxu0
    %731 = vmatpush.bf16.msra.mxu0 %v518
    %732 = vmatpush.bf16.msra.mxu0 %v517
    %733 = vmatpush.bf16.msra.mxu0 %v516
    %734 = vmatpush.bf16.msra.mxu0 %v515
    %735 = vmatpush.bf16.msra.mxu0 %v514
    %736 = vmatpush.bf16.msra.mxu0 %v513
    %737 = vmatpush.bf16.msra.mxu0 %v512
    %738 = vmatpush.bf16.msra.mxu0 %v511
    %739 = vmatmul.bf16.gmra.mxu0 %v274
    %v740 = vpop.f32.mrf.mxu0
    %v741 = vadd.f32 %v692, %v740
    %v742 = vpop.f32.mrf.mxu0
    %v743 = vadd.f32 %v694, %v742
    %744 = vmatmul.bf16.gmra.mxu0 %v279
    %v745 = vpop.f32.mrf.mxu0
    %v746 = vadd.f32 %v697, %v745
    %v747 = vpop.f32.mrf.mxu0
    %v748 = vadd.f32 %v699, %v747
    %749 = vmatmul.bf16.gmra.mxu0 %v284
    %v750 = vpop.f32.mrf.mxu0
    %v751 = vadd.f32 %v702, %v750
    %v752 = vpop.f32.mrf.mxu0
    %v753 = vadd.f32 %v704, %v752
    %754 = vmatmul.bf16.gmra.mxu0 %v289
    %v755 = vpop.f32.mrf.mxu0
    %v756 = vadd.f32 %v707, %v755
    %v757 = vpop.f32.mrf.mxu0
    %v758 = vadd.f32 %v709, %v757
    %759 = vmatmul.bf16.gmra.mxu0 %v294
    %v760 = vpop.f32.mrf.mxu0
    %v761 = vadd.f32 %v712, %v760
    %v762 = vpop.f32.mrf.mxu0
    %v763 = vadd.f32 %v714, %v762
    %764 = vmatmul.bf16.gmra.mxu0 %v299
    %v765 = vpop.f32.mrf.mxu0
    %v766 = vadd.f32 %v717, %v765
    %v767 = vpop.f32.mrf.mxu0
    %v768 = vadd.f32 %v719, %v767
    %769 = vmatmul.bf16.gmra.mxu0 %v304
    %v770 = vpop.f32.mrf.mxu0
    %v771 = vadd.f32 %v722, %v770
    %v772 = vpop.f32.mrf.mxu0
    %v773 = vadd.f32 %v724, %v772
    %774 = vmatmul.bf16.gmra.mxu0 %v309
    %v775 = vpop.f32.mrf.mxu0
    %v776 = vadd.f32 %v727, %v775
    %v777 = vpop.f32.mrf.mxu0
    %v778 = vadd.f32 %v729, %v777
    %779 = vdwg.mxu0
    %780 = vmatpush.bf16.msra.mxu0 0
    %781 = vmatpush.bf16.msra.mxu0 0
    %782 = vmatpush.bf16.msra.mxu0 0
    %783 = vmatpush.bf16.msra.mxu0 0
    %784 = vmatpush.bf16.msra.mxu0 %v522
    %785 = vmatpush.bf16.msra.mxu0 %v521
    %786 = vmatpush.bf16.msra.mxu0 %v520
    %787 = vmatpush.bf16.msra.mxu0 %v519
    %788 = vmatmul.bf16.gmra.mxu0 %v561
    %v789 = vpop.f32.mrf.mxu0
    %v790 = vadd.f32 %v741, %v789
    %v791 = vpop.f32.mrf.mxu0
    %v792 = vadd.f32 %v743, %v791
    %793 = vmatmul.bf16.gmra.mxu0 %v564
    %v794 = vpop.f32.mrf.mxu0
    %v795 = vadd.f32 %v746, %v794
    %v796 = vpop.f32.mrf.mxu0
    %v797 = vadd.f32 %v748, %v796
    %798 = vmatmul.bf16.gmra.mxu0 %v567
    %v799 = vpop.f32.mrf.mxu0
    %v800 = vadd.f32 %v751, %v799
    %v801 = vpop.f32.mrf.mxu0
    %v802 = vadd.f32 %v753, %v801
    %803 = vmatmul.bf16.gmra.mxu0 %v570
    %v804 = vpop.f32.mrf.mxu0
    %v805 = vadd.f32 %v756, %v804
    %v806 = vpop.f32.mrf.mxu0
    %v807 = vadd.f32 %v758, %v806
    %808 = vmatmul.bf16.gmra.mxu0 %v573
    %v809 = vpop.f32.mrf.mxu0
    %v810 = vadd.f32 %v761, %v809
    %v811 = vpop.f32.mrf.mxu0
    %v812 = vadd.f32 %v763, %v811
    %813 = vmatmul.bf16.gmra.mxu0 %v576
    %v814 = vpop.f32.mrf.mxu0
    %v815 = vadd.f32 %v766, %v814
    %v816 = vpop.f32.mrf.mxu0
    %v817 = vadd.f32 %v768, %v816
    %818 = vmatmul.bf16.gmra.mxu0 %v579
    %v819 = vpop.f32.mrf.mxu0
    %v820 = vadd.f32 %v771, %v819
    %v821 = vpop.f32.mrf.mxu0
    %v822 = vadd.f32 %v773, %v821
    %823 = vmatmul.bf16.gmra.mxu0 %v582
    %v824 = vpop.f32.mrf.mxu0
    %v825 = vadd.f32 %v776, %v824
    %v826 = vpop.f32.mrf.mxu0
    %v827 = vadd.f32 %v778, %v826
    %828 = vdwg.mxu0
    %v829 = vld [vmem:[%s3] sm:$0xff]
    %v830 = vld [vmem:[%s3 + $0x8] sm:$0xff]
    %v831 = vld [vmem:[%s3 + $0x10] sm:$0xff]
    %v832 = vld [vmem:[%s3 + $0x18] sm:$0xff]
    %v833 = vld [vmem:[%s3 + $0x20] sm:$0xff]
    %v834 = vld [vmem:[%s3 + $0x28] sm:$0xff]
    %v835 = vld [vmem:[%s3 + $0x30] sm:$0xff]
    %v836 = vld [vmem:[%s3 + $0x38] sm:$0xff]
    %v837 = vld [vmem:[%s3 + $0x40] sm:$0xff]
    %v838 = vld [vmem:[%s3 + $0x48] sm:$0xff]
    %v839 = vld [vmem:[%s3 + $0x50] sm:$0xff]
    %v840 = vld [vmem:[%s3 + $0x58] sm:$0xff]
    %v841 = vld [vmem:[%s3 + $0x60] sm:$0xff]
    %v842 = vld [vmem:[%s3 + $0x68] sm:$0xff]
    %v843 = vld [vmem:[%s3 + $0x70] sm:$0xff]
    %v844 = vld [vmem:[%s3 + $0x78] sm:$0xff]
    %v845 = vadd.f32 %v790, %v829
    %v846 = vadd.f32 %v792, %v830
    %v847 = vadd.f32 %v795, %v831
    %v848 = vadd.f32 %v797, %v832
    %v849 = vadd.f32 %v800, %v833
    %v850 = vadd.f32 %v802, %v834
    %v851 = vadd.f32 %v805, %v835
    %v852 = vadd.f32 %v807, %v836
    %v853 = vadd.f32 %v810, %v837
    %v854 = vadd.f32 %v812, %v838
    %v855 = vadd.f32 %v815, %v839
    %v856 = vadd.f32 %v817, %v840
    %v857 = vadd.f32 %v820, %v841
    %v858 = vadd.f32 %v822, %v842
    %v859 = vadd.f32 %v825, %v843
    %v860 = vadd.f32 %v827, %v844
    %v861 = vmax.f32 %v845, 0.0
    %v862 = vmax.f32 %v846, 0.0
    %v863 = vmax.f32 %v847, 0.0
    %v864 = vmax.f32 %v848, 0.0
    %v865 = vmax.f32 %v849, 0.0
    %v866 = vmax.f32 %v850, 0.0
    %v867 = vmax.f32 %v851, 0.0
    %v868 = vmax.f32 %v852, 0.0
    %v869 = vmax.f32 %v853, 0.0
    %v870 = vmax.f32 %v854, 0.0
    %v871 = vmax.f32 %v855, 0.0
    %v872 = vmax.f32 %v856, 0.0
    %v873 = vmax.f32 %v857, 0.0
    %v874 = vmax.f32 %v858, 0.0
    %v875 = vmax.f32 %v859, 0.0
    %v876 = vmax.f32 %v860, 0.0
    %877 = vst.msk [vmem:[#allocation2] sm:$0xff] %vm559, %v861
    %878 = vst.msk [vmem:[#allocation2 + $0x8] sm:$0xff] %vm559, %v862
    %879 = vst.msk [vmem:[#allocation2 + $0x10] sm:$0xff] %vm559, %v863
    %880 = vst.msk [vmem:[#allocation2 + $0x18] sm:$0xff] %vm559, %v864
    %881 = vst.msk [vmem:[#allocation2 + $0x20] sm:$0xff] %vm559, %v865
    %882 = vst.msk [vmem:[#allocation2 + $0x28] sm:$0xff] %vm559, %v866
    %883 = vst.msk [vmem:[#allocation2 + $0x30] sm:$0xff] %vm559, %v867
    %884 = vst.msk [vmem:[#allocation2 + $0x38] sm:$0xff] %vm559, %v868
    %885 = vst.msk [vmem:[#allocation2 + $0x40] sm:$0xff] %vm559, %v869
    %886 = vst.msk [vmem:[#allocation2 + $0x48] sm:$0xff] %vm559, %v870
    %887 = vst.msk [vmem:[#allocation2 + $0x50] sm:$0xff] %vm559, %v871
    %888 = vst.msk [vmem:[#allocation2 + $0x58] sm:$0xff] %vm559, %v872
    %889 = vst.msk [vmem:[#allocation2 + $0x60] sm:$0xff] %vm559, %v873
    %890 = vst.msk [vmem:[#allocation2 + $0x68] sm:$0xff] %vm559, %v874
    %891 = vst.msk [vmem:[#allocation2 + $0x70] sm:$0xff] %vm559, %v875
    %892 = vst.msk [vmem:[#allocation2 + $0x78] sm:$0xff] %vm559, %v876
    // Predicated region
    $region18: #{basic_block_forward.5} parent=1 // pred_check
      _
    $region19: #{basic_block_forward.5} parent=1 // pred_check_branch
      %894 = sbr.rel (0) target = $region21
    $region20: #{basic_block_forward.5} parent=1 // pred_region
      %896 = vsyncadd [#allocation3], 0
      %s897 = sshll.u32 [#allocation2], 4
      %s898 = int_to_ptr.vmem [resolvable:$true] %s897
      %s899 = sshll.u32 %s4, 4
      %s900 = int_to_ptr.hbm [resolvable:$true] %s899
      %905 = dma.vmem_to_hbm [thread:$0]  %s898, 2048, %s900, [#allocation3], 128, 128, 8
    $region21: #{basic_block_forward.5} parent=1 // pred_fallthru
      _
    // Predicated region
    $region22: #{basic_block_forward.5} parent=1 // pred_check
      _
    $region23: #{basic_block_forward.5} parent=1 // pred_check_branch
      %907 = sbr.rel (0) target = $region25
    $region24: #{basic_block_forward.5} parent=1 // pred_region
      %909 = dma.done [#allocation3], 2048
    $region25: #{basic_block_forward.5} parent=1 // pred_fallthru
      _
    %910 = vsyncpa [#allocation3], 1

</llo_original>
